<compile_context>
chip_gen: v5e
topology: v5e:2x2
jax: 0.10.0
libtpu: 0.0.40
codegen_flags: <defaults>
</compile_context>

<pallas_src>
import jax
import jax.numpy as jnp
from jax import lax
from jax.experimental import pallas as pl
from jax.experimental.pallas import tpu as pltpu

# ----------------------------- small BERT config -----------------------------
VOCAB = 64
MAX_POS = 16
TYPE_VOCAB = 2
B = 2            # batch
S = 8            # sequence length
N = B * S        # flattened rows
HID = 32         # hidden size
HEADS = 2
HEAD_DIM = HID // HEADS
FFN = 64         # intermediate size
LAYERS = 2
NUM_CLASSES = 4  # multi-class path (is_binary == False -> cross_entropy + argmax)

LOG2_S = S.bit_length() - 1
assert S == (1 << LOG2_S), "S must be a power of two for the in-kernel mask math"

# ------------------------- f32 vector-slab row layout -------------------------
VEC_W = 128                    # lane-width slab; every vector row fits in 128 cols
POS0 = 0                       # rows 0..N-1: position embeddings tiled over batch
EMB_LN_G = 16
EMB_LN_B = 17
SEG0 = 18                      # segment embedding row 0
SEG1 = 19                      # segment embedding row 1
LAYER0 = 24                    # per-layer blocks start here (8 rows per layer)
L_STRIDE = 8
R_BQKV, R_BO, R_LN1G, R_LN1B, R_B1, R_B2, R_LN2G, R_LN2B = range(8)
POOL_B = LAYER0 + L_STRIDE * LAYERS          # 40
CLS_B = POOL_B + 1                           # 41 (cls bias, padded to HID cols)
VEC_ROWS = 48


# ----------------------------- fused Pallas kernel ----------------------------
def _fused_bert_kernel(tok_ref, scal_ref, wemb_ref, vecs_ref,
                       wqkv_ref, wo_ref, w1_ref, w2_ref, headw_ref,
                       loss_ref, preds_ref):
    f32 = jnp.float32
    bf16 = jnp.bfloat16

    def vrow(r, w):
        # (1, w) f32 view of one packed vector row (static slice of the slab)
        return vecs_ref[r:r + 1, 0:w]

    def ln(x, g, b_, eps=1e-12):
        mu = jnp.mean(x, axis=-1, keepdims=True)
        var = jnp.mean((x - mu) ** 2, axis=-1, keepdims=True)
        return (x - mu) * lax.rsqrt(var + eps) * g + b_

    ids = tok_ref[:, 0:1]                                         # (N, 1) i32
    segs = tok_ref[:, 1:2]                                        # (N, 1) i32

    # ---- embeddings: one-hot matmul gather (MXU) + VPU segment select -------
    v_iota = lax.broadcasted_iota(jnp.int32, (N, VOCAB), 1)
    word = jnp.dot((v_iota == ids).astype(bf16), wemb_ref[...],
                   preferred_element_type=f32)                    # (N, HID)
    seg_e = jnp.where(segs == 0, vrow(SEG0, HID), vrow(SEG1, HID))  # (N, HID)
    pos_e = vecs_ref[POS0:POS0 + N, 0:HID]                        # (N, HID)
    h = ln(word + seg_e + pos_e, vrow(EMB_LN_G, HID), vrow(EMB_LN_B, HID))

    # ---- additive attention-mask bias: block-diag per example + key padding --
    q_idx = lax.broadcasted_iota(jnp.int32, (N, N), 0)
    k_idx = lax.broadcasted_iota(jnp.int32, (N, N), 1)
    q_b = q_idx >> LOG2_S                                         # example id of query
    k_b = k_idx >> LOG2_S                                         # example id of key
    k_pos = k_idx & (S - 1)                                       # key position in example
    len_k = jnp.zeros((N, N), jnp.int32)
    for b in range(B):                                            # static unroll, B=2
        len_k = jnp.where(k_b == b, scal_ref[0, b], len_k)        # SMEM scalar read
    valid = jnp.logical_and(q_b == k_b, k_pos < len_k)
    mask_bias = jnp.where(valid, 0.0, -1e9).astype(f32)[None]     # (1, N, N)

    # ---- encoder layers (static unroll; all weights resident in VMEM) -------
    for l in range(LAYERS):
        base = LAYER0 + l * L_STRIDE
        xb = h.astype(bf16)

        # fused QKV projection (scale pre-folded into q weights/bias)
        qkv = jnp.dot(xb, wqkv_ref[l], preferred_element_type=f32) \
            + vrow(base + R_BQKV, 3 * HID)                        # (N, 3*HID)

        q = jnp.stack([qkv[:, h_i * HEAD_DIM:(h_i + 1) * HEAD_DIM]
                       for h_i in range(HEADS)])                  # (H, N, hd)
        k = jnp.stack([qkv[:, HID + h_i * HEAD_DIM:HID + (h_i + 1) * HEAD_DIM]
                       for h_i in range(HEADS)])
        v = jnp.stack([qkv[:, 2 * HID + h_i * HEAD_DIM:2 * HID + (h_i + 1) * HEAD_DIM]
                       for h_i in range(HEADS)])

        s = jnp.einsum('hqd,hkd->hqk', q.astype(bf16), k.astype(bf16),
                       preferred_element_type=f32) + mask_bias    # (H, N, N)
        s = s - jnp.max(s, axis=-1, keepdims=True)
        p = jnp.exp(s)
        p = p / jnp.sum(p, axis=-1, keepdims=True)                # exact softmax

        ctx = jnp.einsum('hqk,hkd->hqd', p.astype(bf16), v.astype(bf16),
                         preferred_element_type=f32)              # (H, N, hd)

        # output projection: concat heads along lanes -> single 2D matmul
        ctx_cat = jnp.concatenate([ctx[h_i] for h_i in range(HEADS)], axis=-1)
        attn_out = jnp.dot(ctx_cat.astype(bf16), wo_ref[l],
                           preferred_element_type=f32)            # (N, HID)
        h = ln(h + attn_out + vrow(base + R_BO, HID),
               vrow(base + R_LN1G, HID), vrow(base + R_LN1B, HID))

        # feed-forward
        ff = jnp.dot(h.astype(bf16), w1_ref[l],
                     preferred_element_type=f32) + vrow(base + R_B1, FFN)
        # TODO(synk): texar's BertGELU uses the exact erf form; tanh approx kept
        # here (erf has no guaranteed Mosaic lowering) -> ~1e-3 activation drift.
        ff = jax.nn.gelu(ff, approximate=True)                    # f32 EUP path
        ff = jnp.dot(ff.astype(bf16), w2_ref[l],
                     preferred_element_type=f32) + vrow(base + R_B2, HID)
        h = ln(h + ff, vrow(base + R_LN2G, HID), vrow(base + R_LN2B, HID))

    # ---- pooler + classifier (CLS rows via static row slices) ----------------
    h_cls = jnp.concatenate([h[b * S:b * S + 1, :] for b in range(B)], axis=0)  # (B, HID)
    pooled = jnp.tanh(jnp.dot(h_cls.astype(bf16), headw_ref[0:HID, :],
                              preferred_element_type=f32) + vrow(POOL_B, HID))
    logits_full = jnp.dot(pooled.astype(bf16), headw_ref[HID:2 * HID, :],
                          preferred_element_type=f32) + vrow(CLS_B, HID)  # (B, HID)
    logits = logits_full[:, 0:NUM_CLASSES]                        # (B, C)

    # ---- cross-entropy (mean) + argmax preds (labels from SMEM) --------------
    row_b = lax.broadcasted_iota(jnp.int32, (B, NUM_CLASSES), 0)
    col_c = lax.broadcasted_iota(jnp.int32, (B, NUM_CLASSES), 1)
    lab = jnp.zeros((B, NUM_CLASSES), jnp.int32)
    for b in range(B):
        lab = jnp.where(row_b == b, scal_ref[1, b], lab)
    onehot = (col_c == lab).astype(f32)

    m = jnp.max(logits, axis=-1, keepdims=True)
    z = logits - m
    lse = jnp.log(jnp.sum(jnp.exp(z), axis=-1, keepdims=True))
    logp = z - lse
    nll = -jnp.sum(onehot * logp, axis=-1, keepdims=True)         # (B, 1)
    loss_ref[...] = jnp.mean(nll, axis=0, keepdims=True)          # (1, 1)

    # first-occurrence argmax (torch.argmax semantics)
    idx = jnp.where(logits == m, col_c, NUM_CLASSES)
    preds_ref[...] = jnp.min(idx, axis=-1, keepdims=True)         # (B, 1) i32


# ----------------------------- parameter init ---------------------------------
def init_params(key):
    keys = iter(jax.random.split(key, 32))

    def nrm(shape, scale=0.02):
        return (scale * jax.random.normal(next(keys), shape)).astype(jnp.float32)

    zeros = lambda *s: jnp.zeros(s, jnp.float32)
    ones = lambda *s: jnp.ones(s, jnp.float32)

    params = {
        "word_emb": nrm((VOCAB, HID)),
        "pos_emb": nrm((MAX_POS, HID)),
        "seg_emb": nrm((TYPE_VOCAB, HID)),
        "emb_ln_g": ones(HID), "emb_ln_b": zeros(HID),
        "layers": [],
        "pool_w": nrm((HID, HID)), "pool_b": zeros(HID),
        "cls_w": nrm((HID, NUM_CLASSES)), "cls_b": zeros(NUM_CLASSES),
    }
    for _ in range(LAYERS):
        params["layers"].append({
            "wq": nrm((HID, HID)), "bq": zeros(HID),
            "wk": nrm((HID, HID)), "bk": zeros(HID),
            "wv": nrm((HID, HID)), "bv": zeros(HID),
            "wo": nrm((HID, HID)), "bo": zeros(HID),
            "ln1_g": ones(HID), "ln1_b": zeros(HID),
            "w1": nrm((HID, FFN)), "b1": zeros(FFN),
            "w2": nrm((FFN, HID)), "b2": zeros(HID),
            "ln2_g": ones(HID), "ln2_b": zeros(HID),
        })
    return params


def prepare_params(params):
    """Host-side one-time packing: stacked bf16 weight slabs + one f32 vector
    slab.  Call ONCE and cache the result (not on the per-forward path)."""
    bf = lambda x: x.astype(jnp.bfloat16)
    L = params["layers"]
    scale = 1.0 / float(HEAD_DIM) ** 0.5

    # fused QKV weights; 1/sqrt(head_dim) folded into the q columns
    wqkv = bf(jnp.stack([jnp.concatenate([l["wq"] * scale, l["wk"], l["wv"]], axis=1)
                         for l in L]))                             # (L, HID, 3*HID)
    wo = bf(jnp.stack([l["wo"] for l in L]))                       # (L, HID, HID)
    w1 = bf(jnp.stack([l["w1"] for l in L]))                       # (L, HID, FFN)
    w2 = bf(jnp.stack([l["w2"] for l in L]))                       # (L, FFN, HID)

    cls_w_pad = jnp.zeros((HID, HID), jnp.float32).at[:, :NUM_CLASSES].set(params["cls_w"])
    headw = bf(jnp.concatenate([params["pool_w"], cls_w_pad], axis=0))  # (2*HID, HID)

    # f32 vector slab: pos emb + LN params + every bias, one array, one DMA
    vecs = jnp.zeros((VEC_ROWS, VEC_W), jnp.float32)

    def put(slab, row, v):
        v = jnp.asarray(v, jnp.float32)
        if v.ndim == 1:
            v = v.reshape(1, -1)
        return slab.at[row:row + v.shape[0], 0:v.shape[1]].set(v)

    pos_tiled = jnp.tile(params["pos_emb"][:S], (B, 1))            # (N, HID)
    vecs = put(vecs, POS0, pos_tiled)
    vecs = put(vecs, EMB_LN_G, params["emb_ln_g"])
    vecs = put(vecs, EMB_LN_B, params["emb_ln_b"])
    vecs = put(vecs, SEG0, params["seg_emb"])                      # rows SEG0, SEG1
    for i, l in enumerate(L):
        base = LAYER0 + i * L_STRIDE
        bqkv = jnp.concatenate([l["bq"] * scale, l["bk"], l["bv"]])
        vecs = put(vecs, base + R_BQKV, bqkv)
        vecs = put(vecs, base + R_BO, l["bo"])
        vecs = put(vecs, base + R_LN1G, l["ln1_g"])
        vecs = put(vecs, base + R_LN1B, l["ln1_b"])
        vecs = put(vecs, base + R_B1, l["b1"])
        vecs = put(vecs, base + R_B2, l["b2"])
        vecs = put(vecs, base + R_LN2G, l["ln2_g"])
        vecs = put(vecs, base + R_LN2B, l["ln2_b"])
    vecs = put(vecs, POOL_B, params["pool_b"])
    vecs = put(vecs, CLS_B, params["cls_b"])

    return {
        "wemb": bf(params["word_emb"]),
        "vecs": vecs,
        "wqkv": wqkv, "wo": wo, "w1": w1, "w2": w2,
        "headw": headw,
    }


# ----------------------------- model forward ----------------------------------
@jax.jit
def _fused_forward(w, input_ids, segment_ids, labels):
    """One fused pallas_call for the whole forward pass.  Returns (loss, preds)."""
    ids = input_ids.reshape(N, 1).astype(jnp.int32)
    segs = segment_ids.reshape(N, 1).astype(jnp.int32)
    tok = jnp.concatenate([ids, segs], axis=1)                     # (N, 2) i32
    # input_length = (1 - (input_ids == 0).int()).sum(dim=1)
    lengths = jnp.sum((input_ids != 0).astype(jnp.int32), axis=1)  # (B,)
    scal = jnp.stack([lengths, labels.astype(jnp.int32)])          # (2, B) -> SMEM

    vmem = pl.BlockSpec(memory_space=pltpu.MemorySpace.VMEM)
    smem = pl.BlockSpec(memory_space=pltpu.MemorySpace.SMEM)

    loss, preds = pl.pallas_call(
        _fused_bert_kernel,
        out_shape=(jax.ShapeDtypeStruct((1, 1), jnp.float32),
                   jax.ShapeDtypeStruct((B, 1), jnp.int32)),
        in_specs=[vmem, smem, vmem, vmem, vmem, vmem, vmem, vmem, vmem],
        out_specs=(vmem, vmem),
        compiler_params=pltpu.CompilerParams(vmem_limit_bytes=32 * 1024 * 1024),
    )(tok, scal, w["wemb"], w["vecs"], w["wqkv"], w["wo"], w["w1"], w["w2"], w["headw"])
    return loss[0, 0], preds[:, 0]


def model_wrapper_forward(prepared, batch):
    """Mirror of ModelWrapper.forward -> {'loss', 'preds'}."""
    loss, preds = _fused_forward(prepared, batch["input_ids"],
                                 batch["segment_ids"], batch["label_ids"])
    return {"loss": loss, "preds": preds}


def model_wrapper_predict(prepared, batch):
    """Mirror of ModelWrapper.predict -> {'preds'}."""
    # TODO(synk): the fused kernel always computes the (cheap) CE term; for
    # predict we feed zero labels and discard the loss.
    zero_labels = jnp.zeros((B,), jnp.int32)
    _, preds = _fused_forward(prepared, batch["input_ids"],
                              batch["segment_ids"], zero_labels)
    return {"preds": preds}


# ----------------------------- main -------------------------------------------
if __name__ == "__main__":
    key = jax.random.PRNGKey(0)
    k_param, k_ids, k_lab = jax.random.split(key, 3)

    params = init_params(k_param)
    prepared = prepare_params(params)          # one-time weight packing (cached)

    input_ids = jax.random.randint(k_ids, (B, S), 1, VOCAB, dtype=jnp.int32)
    input_ids = input_ids.at[0, 6:].set(0)     # padding (id 0) on first example
    input_ids = input_ids.at[1, 5:].set(0)     # padding on second example
    segment_ids = jnp.zeros((B, S), jnp.int32).at[:, S // 2:].set(1)
    labels = jax.random.randint(k_lab, (B,), 0, NUM_CLASSES, dtype=jnp.int32)

    batch = {"input_ids": input_ids, "segment_ids": segment_ids, "label_ids": labels}

    out = model_wrapper_forward(prepared, batch)
    loss = jax.block_until_ready(out["loss"])
    preds = jax.block_until_ready(out["preds"])

    pred_out = model_wrapper_predict(prepared, batch)
    jax.block_until_ready(pred_out["preds"])

    assert loss.shape == () and preds.shape == (B,)
    assert bool(jnp.isfinite(loss))
    assert bool(jnp.all(preds >= 0)) and bool(jnp.all(preds < NUM_CLASSES))
    print("KERNEL_OK")
</pallas_src>

<mosaic_0001>
module attributes {stable_mosaic.version = 11 : i64} {
  func.func @_fused_bert_kernel(%arg0: memref<16x2xi32, #tpu.memory_space<vmem>>, %arg1: memref<2x2xi32, #tpu.memory_space<smem>>, %arg2: memref<64x32xbf16, #tpu.memory_space<vmem>>, %arg3: memref<48x128xf32, #tpu.memory_space<vmem>>, %arg4: memref<2x32x96xbf16, #tpu.memory_space<vmem>>, %arg5: memref<2x32x32xbf16, #tpu.memory_space<vmem>>, %arg6: memref<2x32x64xbf16, #tpu.memory_space<vmem>>, %arg7: memref<2x64x32xbf16, #tpu.memory_space<vmem>>, %arg8: memref<64x32xbf16, #tpu.memory_space<vmem>>, %arg9: memref<1x1xf32, #tpu.memory_space<vmem>>, %arg10: memref<2x1xi32, #tpu.memory_space<vmem>>) attributes {dimension_semantics = [], scalar_prefetch = 0 : i64, scratch_operands = 0 : i64, tpu.core_type = #tpu.core_type<tc>} {
    %c0 = arith.constant 0 : index
    %c0_0 = arith.constant 0 : index
    %0 = vector.load %arg0[%c0, %c0_0] : memref<16x2xi32, #tpu.memory_space<vmem>>, vector<16x1xi32>
    %c0_1 = arith.constant 0 : index
    %c1 = arith.constant 1 : index
    %1 = vector.load %arg0[%c0_1, %c1] : memref<16x2xi32, #tpu.memory_space<vmem>>, vector<16x1xi32>
    %2 = tpu.iota {dimensions = array<i32: 1>} : vector<16x64xi32>
    %3 = vector.broadcast %0 : vector<16x1xi32> to vector<16x64xi32>
    %4 = arith.cmpi eq, %2, %3 : vector<16x64xi32>
    %5 = arith.extui %4 : vector<16x64xi1> to vector<16x64xi32>
    %6 = arith.sitofp %5 : vector<16x64xi32> to vector<16x64xf32>
    %7 = arith.truncf %6 : vector<16x64xf32> to vector<16x64xbf16>
    %c0_2 = arith.constant 0 : index
    %c0_3 = arith.constant 0 : index
    %8 = vector.load %arg2[%c0_2, %c0_3] : memref<64x32xbf16, #tpu.memory_space<vmem>>, vector<64x32xbf16>
    %cst = arith.constant dense<0.000000e+00> : vector<16x32xf32>
    %9 = tpu.matmul %7, %8, %cst {dimension_numbers = #tpu.dot_dimension_numbers<[1], [0], [0], [1], [0, 0, 1, 1], [], []>} : vector<16x64xbf16>, vector<64x32xbf16>, vector<16x32xf32> -> vector<16x32xf32>
    %c0_i32 = arith.constant 0 : i32
    %10 = vector.broadcast %c0_i32 : i32 to vector<16x1xi32>
    %11 = arith.cmpi eq, %1, %10 : vector<16x1xi32>
    %c18 = arith.constant 18 : index
    %c0_4 = arith.constant 0 : index
    %12 = vector.load %arg3[%c18, %c0_4] : memref<48x128xf32, #tpu.memory_space<vmem>>, vector<1x32xf32>
    %c19 = arith.constant 19 : index
    %c0_5 = arith.constant 0 : index
    %13 = vector.load %arg3[%c19, %c0_5] : memref<48x128xf32, #tpu.memory_space<vmem>>, vector<1x32xf32>
    %14 = vector.shape_cast %11 : vector<16x1xi1> to vector<16x1xi1>
    %15 = vector.broadcast %14 : vector<16x1xi1> to vector<16x32xi1>
    %16 = vector.shape_cast %12 : vector<1x32xf32> to vector<1x32xf32>
    %17 = vector.broadcast %16 : vector<1x32xf32> to vector<16x32xf32>
    %18 = vector.shape_cast %13 : vector<1x32xf32> to vector<1x32xf32>
    %19 = vector.broadcast %18 : vector<1x32xf32> to vector<16x32xf32>
    %20 = arith.select %15, %17, %19 : vector<16x32xi1>, vector<16x32xf32>
    %c0_6 = arith.constant 0 : index
    %c0_7 = arith.constant 0 : index
    %21 = vector.load %arg3[%c0_6, %c0_7] : memref<48x128xf32, #tpu.memory_space<vmem>>, vector<16x32xf32>
    %22 = arith.addf %9, %20 : vector<16x32xf32>
    %23 = arith.addf %22, %21 : vector<16x32xf32>
    %c16 = arith.constant 16 : index
    %c0_8 = arith.constant 0 : index
    %24 = vector.load %arg3[%c16, %c0_8] : memref<48x128xf32, #tpu.memory_space<vmem>>, vector<1x32xf32>
    %c17 = arith.constant 17 : index
    %c0_9 = arith.constant 0 : index
    %25 = vector.load %arg3[%c17, %c0_9] : memref<48x128xf32, #tpu.memory_space<vmem>>, vector<1x32xf32>
    %cst_10 = arith.constant dense<0.000000e+00> : vector<16xf32>
    %26 = vector.multi_reduction <add>, %23, %cst_10 [1] : vector<16x32xf32> to vector<16xf32>
    %27 = vector.shape_cast %26 : vector<16xf32> to vector<16x1xf32>
    %cst_11 = arith.constant 3.200000e+01 : f32
    %28 = vector.broadcast %cst_11 : f32 to vector<16x1xf32>
    %29 = arith.divf %27, %28 : vector<16x1xf32>
    %30 = vector.broadcast %29 : vector<16x1xf32> to vector<16x32xf32>
    %31 = arith.subf %23, %30 : vector<16x32xf32>
    %32 = arith.mulf %31, %31 : vector<16x32xf32>
    %cst_12 = arith.constant dense<0.000000e+00> : vector<16xf32>
    %33 = vector.multi_reduction <add>, %32, %cst_12 [1] : vector<16x32xf32> to vector<16xf32>
    %34 = vector.shape_cast %33 : vector<16xf32> to vector<16x1xf32>
    %cst_13 = arith.constant 3.200000e+01 : f32
    %35 = vector.broadcast %cst_13 : f32 to vector<16x1xf32>
    %36 = arith.divf %34, %35 : vector<16x1xf32>
    %37 = vector.broadcast %29 : vector<16x1xf32> to vector<16x32xf32>
    %38 = arith.subf %23, %37 : vector<16x32xf32>
    %cst_14 = arith.constant 9.99999996E-13 : f32
    %39 = vector.broadcast %cst_14 : f32 to vector<16x1xf32>
    %40 = arith.addf %36, %39 : vector<16x1xf32>
    %41 = math.rsqrt %40 : vector<16x1xf32>
    %42 = vector.broadcast %41 : vector<16x1xf32> to vector<16x32xf32>
    %43 = arith.mulf %38, %42 : vector<16x32xf32>
    %44 = vector.broadcast %24 : vector<1x32xf32> to vector<16x32xf32>
    %45 = arith.mulf %43, %44 : vector<16x32xf32>
    %46 = vector.broadcast %25 : vector<1x32xf32> to vector<16x32xf32>
    %47 = arith.addf %45, %46 : vector<16x32xf32>
    %48 = tpu.iota {dimensions = array<i32: 0>} : vector<16x16xi32>
    %49 = tpu.iota {dimensions = array<i32: 1>} : vector<16x16xi32>
    %c3_i32 = arith.constant 3 : i32
    %50 = vector.broadcast %c3_i32 : i32 to vector<16x16xi32>
    %51 = arith.shrsi %48, %50 : vector<16x16xi32>
    %c3_i32_15 = arith.constant 3 : i32
    %52 = vector.broadcast %c3_i32_15 : i32 to vector<16x16xi32>
    %53 = arith.shrsi %49, %52 : vector<16x16xi32>
    %c7_i32 = arith.constant 7 : i32
    %54 = vector.broadcast %c7_i32 : i32 to vector<16x16xi32>
    %55 = arith.andi %49, %54 : vector<16x16xi32>
    %c0_i32_16 = arith.constant 0 : i32
    %56 = vector.broadcast %c0_i32_16 : i32 to vector<16x16xi32>
    %c0_i32_17 = arith.constant 0 : i32
    %57 = vector.broadcast %c0_i32_17 : i32 to vector<16x16xi32>
    %58 = arith.cmpi eq, %53, %57 : vector<16x16xi32>
    %c0_18 = arith.constant 0 : index
    %c0_19 = arith.constant 0 : index
    %59 = memref.load %arg1[%c0_18, %c0_19] : memref<2x2xi32, #tpu.memory_space<smem>>
    %60 = vector.broadcast %59 : i32 to vector<16x16xi32>
    %61 = arith.select %58, %60, %56 : vector<16x16xi1>, vector<16x16xi32>
    %c1_i32 = arith.constant 1 : i32
    %62 = vector.broadcast %c1_i32 : i32 to vector<16x16xi32>
    %63 = arith.cmpi eq, %53, %62 : vector<16x16xi32>
    %c0_20 = arith.constant 0 : index
    %c1_21 = arith.constant 1 : index
    %64 = memref.load %arg1[%c0_20, %c1_21] : memref<2x2xi32, #tpu.memory_space<smem>>
    %65 = vector.broadcast %64 : i32 to vector<16x16xi32>
    %66 = arith.select %63, %65, %61 : vector<16x16xi1>, vector<16x16xi32>
    %67 = arith.cmpi eq, %51, %53 : vector<16x16xi32>
    %68 = arith.cmpi slt, %55, %66 : vector<16x16xi32>
    %69 = arith.andi %67, %68 : vector<16x16xi1>
    %cst_22 = arith.constant 0.000000e+00 : f32
    %cst_23 = arith.constant -1.000000e+09 : f32
    %70 = vector.broadcast %cst_22 : f32 to vector<16x16xf32>
    %71 = vector.broadcast %cst_23 : f32 to vector<16x16xf32>
    %72 = arith.select %69, %70, %71 : vector<16x16xi1>, vector<16x16xf32>
    %73 = vector.shape_cast %72 : vector<16x16xf32> to vector<1x16x16xf32>
    %74 = arith.truncf %47 : vector<16x32xf32> to vector<16x32xbf16>
    %c0_24 = arith.constant 0 : index
    %c0_25 = arith.constant 0 : index
    %c0_26 = arith.constant 0 : index
    %75 = vector.load %arg4[%c0_24, %c0_25, %c0_26] : memref<2x32x96xbf16, #tpu.memory_space<vmem>>, vector<1x32x96xbf16>
    %76 = vector.shape_cast %75 : vector<1x32x96xbf16> to vector<32x96xbf16>
    %cst_27 = arith.constant dense<0.000000e+00> : vector<16x96xf32>
    %77 = tpu.matmul %74, %76, %cst_27 {dimension_numbers = #tpu.dot_dimension_numbers<[1], [0], [0], [1], [0, 0, 1, 1], [], []>} : vector<16x32xbf16>, vector<32x96xbf16>, vector<16x96xf32> -> vector<16x96xf32>
    %c24 = arith.constant 24 : index
    %c0_28 = arith.constant 0 : index
    %78 = vector.load %arg3[%c24, %c0_28] : memref<48x128xf32, #tpu.memory_space<vmem>>, vector<1x96xf32>
    %79 = vector.broadcast %78 : vector<1x96xf32> to vector<16x96xf32>
    %80 = arith.addf %77, %79 : vector<16x96xf32>
    %81 = vector.extract_strided_slice %80 {offsets = [0, 0], sizes = [16, 16], strides = [1, 1]} : vector<16x96xf32> to vector<16x16xf32>
    %82 = vector.extract_strided_slice %80 {offsets = [0, 16], sizes = [16, 16], strides = [1, 1]} : vector<16x96xf32> to vector<16x16xf32>
    %83 = vector.shape_cast %81 : vector<16x16xf32> to vector<1x16x16xf32>
    %84 = vector.shape_cast %82 : vector<16x16xf32> to vector<1x16x16xf32>
    %85 = tpu.concatenate %83, %84 in 0 : vector<1x16x16xf32>, vector<1x16x16xf32> -> vector<2x16x16xf32>
    %86 = vector.extract_strided_slice %80 {offsets = [0, 32], sizes = [16, 16], strides = [1, 1]} : vector<16x96xf32> to vector<16x16xf32>
    %87 = vector.extract_strided_slice %80 {offsets = [0, 48], sizes = [16, 16], strides = [1, 1]} : vector<16x96xf32> to vector<16x16xf32>
    %88 = vector.shape_cast %86 : vector<16x16xf32> to vector<1x16x16xf32>
    %89 = vector.shape_cast %87 : vector<16x16xf32> to vector<1x16x16xf32>
    %90 = tpu.concatenate %88, %89 in 0 : vector<1x16x16xf32>, vector<1x16x16xf32> -> vector<2x16x16xf32>
    %91 = vector.extract_strided_slice %80 {offsets = [0, 64], sizes = [16, 16], strides = [1, 1]} : vector<16x96xf32> to vector<16x16xf32>
    %92 = vector.extract_strided_slice %80 {offsets = [0, 80], sizes = [16, 16], strides = [1, 1]} : vector<16x96xf32> to vector<16x16xf32>
    %93 = vector.shape_cast %91 : vector<16x16xf32> to vector<1x16x16xf32>
    %94 = vector.shape_cast %92 : vector<16x16xf32> to vector<1x16x16xf32>
    %95 = tpu.concatenate %93, %94 in 0 : vector<1x16x16xf32>, vector<1x16x16xf32> -> vector<2x16x16xf32>
    %96 = arith.truncf %85 : vector<2x16x16xf32> to vector<2x16x16xbf16>
    %97 = arith.truncf %90 : vector<2x16x16xf32> to vector<2x16x16xbf16>
    "tpu.trace_start"() <{level = 10 : i32, message = "hqd,hkd->hqk"}> : () -> ()
    %cst_29 = arith.constant dense<0.000000e+00> : vector<2x16x16xf32>
    %98 = tpu.matmul %96, %97, %cst_29 {dimension_numbers = #tpu.dot_dimension_numbers<[2], [2], [1], [1], [0, 0, 0, 1, 1, 1], [0], [0]>} : vector<2x16x16xbf16>, vector<2x16x16xbf16>, vector<2x16x16xf32> -> vector<2x16x16xf32>
    "tpu.trace_stop"() : () -> ()
    %99 = vector.broadcast %73 : vector<1x16x16xf32> to vector<2x16x16xf32>
    %100 = arith.addf %98, %99 : vector<2x16x16xf32>
    %cst_30 = arith.constant dense<0xFF800000> : vector<2x16xf32>
    %101 = vector.multi_reduction <maximumf>, %100, %cst_30 [2] : vector<2x16x16xf32> to vector<2x16xf32>
    %102 = vector.shape_cast %101 : vector<2x16xf32> to vector<2x16x1xf32>
    %103 = vector.broadcast %102 : vector<2x16x1xf32> to vector<2x16x16xf32>
    %104 = arith.subf %100, %103 : vector<2x16x16xf32>
    %105 = math.exp %104 : vector<2x16x16xf32>
    %cst_31 = arith.constant dense<0.000000e+00> : vector<2x16xf32>
    %106 = vector.multi_reduction <add>, %105, %cst_31 [2] : vector<2x16x16xf32> to vector<2x16xf32>
    %107 = vector.shape_cast %106 : vector<2x16xf32> to vector<2x16x1xf32>
    %108 = vector.broadcast %107 : vector<2x16x1xf32> to vector<2x16x16xf32>
    %109 = arith.divf %105, %108 : vector<2x16x16xf32>
    %110 = arith.truncf %109 : vector<2x16x16xf32> to vector<2x16x16xbf16>
    %111 = arith.truncf %95 : vector<2x16x16xf32> to vector<2x16x16xbf16>
    "tpu.trace_start"() <{level = 10 : i32, message = "hqk,hkd->hqd"}> : () -> ()
    %cst_32 = arith.constant dense<0.000000e+00> : vector<2x16x16xf32>
    %112 = tpu.matmul %110, %111, %cst_32 {dimension_numbers = #tpu.dot_dimension_numbers<[2], [1], [1], [2], [0, 0, 0, 1, 1, 2], [0], [0]>} : vector<2x16x16xbf16>, vector<2x16x16xbf16>, vector<2x16x16xf32> -> vector<2x16x16xf32>
    "tpu.trace_stop"() : () -> ()
    %113 = vector.extract_strided_slice %112 {offsets = [0, 0, 0], sizes = [1, 16, 16], strides = [1, 1, 1]} : vector<2x16x16xf32> to vector<1x16x16xf32>
    %114 = vector.shape_cast %113 : vector<1x16x16xf32> to vector<16x16xf32>
    %115 = vector.extract_strided_slice %112 {offsets = [1, 0, 0], sizes = [1, 16, 16], strides = [1, 1, 1]} : vector<2x16x16xf32> to vector<1x16x16xf32>
    %116 = vector.shape_cast %115 : vector<1x16x16xf32> to vector<16x16xf32>
    %117 = tpu.concatenate %114, %116 in 1 : vector<16x16xf32>, vector<16x16xf32> -> vector<16x32xf32>
    %118 = arith.truncf %117 : vector<16x32xf32> to vector<16x32xbf16>
    %c0_33 = arith.constant 0 : index
    %c0_34 = arith.constant 0 : index
    %c0_35 = arith.constant 0 : index
    %119 = vector.load %arg5[%c0_33, %c0_34, %c0_35] : memref<2x32x32xbf16, #tpu.memory_space<vmem>>, vector<1x32x32xbf16>
    %120 = vector.shape_cast %119 : vector<1x32x32xbf16> to vector<32x32xbf16>
    %cst_36 = arith.constant dense<0.000000e+00> : vector<16x32xf32>
    %121 = tpu.matmul %118, %120, %cst_36 {dimension_numbers = #tpu.dot_dimension_numbers<[1], [0], [0], [1], [0, 0, 1, 1], [], []>} : vector<16x32xbf16>, vector<32x32xbf16>, vector<16x32xf32> -> vector<16x32xf32>
    %122 = arith.addf %47, %121 : vector<16x32xf32>
    %c25 = arith.constant 25 : index
    %c0_37 = arith.constant 0 : index
    %123 = vector.load %arg3[%c25, %c0_37] : memref<48x128xf32, #tpu.memory_space<vmem>>, vector<1x32xf32>
    %124 = vector.broadcast %123 : vector<1x32xf32> to vector<16x32xf32>
    %125 = arith.addf %122, %124 : vector<16x32xf32>
    %c26 = arith.constant 26 : index
    %c0_38 = arith.constant 0 : index
    %126 = vector.load %arg3[%c26, %c0_38] : memref<48x128xf32, #tpu.memory_space<vmem>>, vector<1x32xf32>
    %c27 = arith.constant 27 : index
    %c0_39 = arith.constant 0 : index
    %127 = vector.load %arg3[%c27, %c0_39] : memref<48x128xf32, #tpu.memory_space<vmem>>, vector<1x32xf32>
    %cst_40 = arith.constant dense<0.000000e+00> : vector<16xf32>
    %128 = vector.multi_reduction <add>, %125, %cst_40 [1] : vector<16x32xf32> to vector<16xf32>
    %129 = vector.shape_cast %128 : vector<16xf32> to vector<16x1xf32>
    %cst_41 = arith.constant 3.200000e+01 : f32
    %130 = vector.broadcast %cst_41 : f32 to vector<16x1xf32>
    %131 = arith.divf %129, %130 : vector<16x1xf32>
    %132 = vector.broadcast %131 : vector<16x1xf32> to vector<16x32xf32>
    %133 = arith.subf %125, %132 : vector<16x32xf32>
    %134 = arith.mulf %133, %133 : vector<16x32xf32>
    %cst_42 = arith.constant dense<0.000000e+00> : vector<16xf32>
    %135 = vector.multi_reduction <add>, %134, %cst_42 [1] : vector<16x32xf32> to vector<16xf32>
    %136 = vector.shape_cast %135 : vector<16xf32> to vector<16x1xf32>
    %cst_43 = arith.constant 3.200000e+01 : f32
    %137 = vector.broadcast %cst_43 : f32 to vector<16x1xf32>
    %138 = arith.divf %136, %137 : vector<16x1xf32>
    %139 = vector.broadcast %131 : vector<16x1xf32> to vector<16x32xf32>
    %140 = arith.subf %125, %139 : vector<16x32xf32>
    %cst_44 = arith.constant 9.99999996E-13 : f32
    %141 = vector.broadcast %cst_44 : f32 to vector<16x1xf32>
    %142 = arith.addf %138, %141 : vector<16x1xf32>
    %143 = math.rsqrt %142 : vector<16x1xf32>
    %144 = vector.broadcast %143 : vector<16x1xf32> to vector<16x32xf32>
    %145 = arith.mulf %140, %144 : vector<16x32xf32>
    %146 = vector.broadcast %126 : vector<1x32xf32> to vector<16x32xf32>
    %147 = arith.mulf %145, %146 : vector<16x32xf32>
    %148 = vector.broadcast %127 : vector<1x32xf32> to vector<16x32xf32>
    %149 = arith.addf %147, %148 : vector<16x32xf32>
    %150 = arith.truncf %149 : vector<16x32xf32> to vector<16x32xbf16>
    %c0_45 = arith.constant 0 : index
    %c0_46 = arith.constant 0 : index
    %c0_47 = arith.constant 0 : index
    %151 = vector.load %arg6[%c0_45, %c0_46, %c0_47] : memref<2x32x64xbf16, #tpu.memory_space<vmem>>, vector<1x32x64xbf16>
    %152 = vector.shape_cast %151 : vector<1x32x64xbf16> to vector<32x64xbf16>
    %cst_48 = arith.constant dense<0.000000e+00> : vector<16x64xf32>
    %153 = tpu.matmul %150, %152, %cst_48 {dimension_numbers = #tpu.dot_dimension_numbers<[1], [0], [0], [1], [0, 0, 1, 1], [], []>} : vector<16x32xbf16>, vector<32x64xbf16>, vector<16x64xf32> -> vector<16x64xf32>
    %c28 = arith.constant 28 : index
    %c0_49 = arith.constant 0 : index
    %154 = vector.load %arg3[%c28, %c0_49] : memref<48x128xf32, #tpu.memory_space<vmem>>, vector<1x64xf32>
    %155 = vector.broadcast %154 : vector<1x64xf32> to vector<16x64xf32>
    %156 = arith.addf %153, %155 : vector<16x64xf32>
    %157 = arith.mulf %156, %156 : vector<16x64xf32>
    %158 = arith.mulf %156, %157 : vector<16x64xf32>
    %cst_50 = arith.constant 4.471500e-02 : f32
    %159 = vector.broadcast %cst_50 : f32 to vector<16x64xf32>
    %160 = arith.mulf %159, %158 : vector<16x64xf32>
    %161 = arith.addf %156, %160 : vector<16x64xf32>
    %cst_51 = arith.constant 0.797884583 : f32
    %162 = vector.broadcast %cst_51 : f32 to vector<16x64xf32>
    %163 = arith.mulf %162, %161 : vector<16x64xf32>
    %164 = math.tanh %163 : vector<16x64xf32>
    %cst_52 = arith.constant 1.000000e+00 : f32
    %165 = vector.broadcast %cst_52 : f32 to vector<16x64xf32>
    %166 = arith.addf %165, %164 : vector<16x64xf32>
    %cst_53 = arith.constant 5.000000e-01 : f32
    %167 = vector.broadcast %cst_53 : f32 to vector<16x64xf32>
    %168 = arith.mulf %167, %166 : vector<16x64xf32>
    %169 = arith.mulf %156, %168 : vector<16x64xf32>
    %170 = arith.truncf %169 : vector<16x64xf32> to vector<16x64xbf16>
    %c0_54 = arith.constant 0 : index
    %c0_55 = arith.constant 0 : index
    %c0_56 = arith.constant 0 : index
    %171 = vector.load %arg7[%c0_54, %c0_55, %c0_56] : memref<2x64x32xbf16, #tpu.memory_space<vmem>>, vector<1x64x32xbf16>
    %172 = vector.shape_cast %171 : vector<1x64x32xbf16> to vector<64x32xbf16>
    %cst_57 = arith.constant dense<0.000000e+00> : vector<16x32xf32>
    %173 = tpu.matmul %170, %172, %cst_57 {dimension_numbers = #tpu.dot_dimension_numbers<[1], [0], [0], [1], [0, 0, 1, 1], [], []>} : vector<16x64xbf16>, vector<64x32xbf16>, vector<16x32xf32> -> vector<16x32xf32>
    %c29 = arith.constant 29 : index
    %c0_58 = arith.constant 0 : index
    %174 = vector.load %arg3[%c29, %c0_58] : memref<48x128xf32, #tpu.memory_space<vmem>>, vector<1x32xf32>
    %175 = vector.broadcast %174 : vector<1x32xf32> to vector<16x32xf32>
    %176 = arith.addf %173, %175 : vector<16x32xf32>
    %177 = arith.addf %149, %176 : vector<16x32xf32>
    %c30 = arith.constant 30 : index
    %c0_59 = arith.constant 0 : index
    %178 = vector.load %arg3[%c30, %c0_59] : memref<48x128xf32, #tpu.memory_space<vmem>>, vector<1x32xf32>
    %c31 = arith.constant 31 : index
    %c0_60 = arith.constant 0 : index
    %179 = vector.load %arg3[%c31, %c0_60] : memref<48x128xf32, #tpu.memory_space<vmem>>, vector<1x32xf32>
    %cst_61 = arith.constant dense<0.000000e+00> : vector<16xf32>
    %180 = vector.multi_reduction <add>, %177, %cst_61 [1] : vector<16x32xf32> to vector<16xf32>
    %181 = vector.shape_cast %180 : vector<16xf32> to vector<16x1xf32>
    %cst_62 = arith.constant 3.200000e+01 : f32
    %182 = vector.broadcast %cst_62 : f32 to vector<16x1xf32>
    %183 = arith.divf %181, %182 : vector<16x1xf32>
    %184 = vector.broadcast %183 : vector<16x1xf32> to vector<16x32xf32>
    %185 = arith.subf %177, %184 : vector<16x32xf32>
    %186 = arith.mulf %185, %185 : vector<16x32xf32>
    %cst_63 = arith.constant dense<0.000000e+00> : vector<16xf32>
    %187 = vector.multi_reduction <add>, %186, %cst_63 [1] : vector<16x32xf32> to vector<16xf32>
    %188 = vector.shape_cast %187 : vector<16xf32> to vector<16x1xf32>
    %cst_64 = arith.constant 3.200000e+01 : f32
    %189 = vector.broadcast %cst_64 : f32 to vector<16x1xf32>
    %190 = arith.divf %188, %189 : vector<16x1xf32>
    %191 = vector.broadcast %183 : vector<16x1xf32> to vector<16x32xf32>
    %192 = arith.subf %177, %191 : vector<16x32xf32>
    %cst_65 = arith.constant 9.99999996E-13 : f32
    %193 = vector.broadcast %cst_65 : f32 to vector<16x1xf32>
    %194 = arith.addf %190, %193 : vector<16x1xf32>
    %195 = math.rsqrt %194 : vector<16x1xf32>
    %196 = vector.broadcast %195 : vector<16x1xf32> to vector<16x32xf32>
    %197 = arith.mulf %192, %196 : vector<16x32xf32>
    %198 = vector.broadcast %178 : vector<1x32xf32> to vector<16x32xf32>
    %199 = arith.mulf %197, %198 : vector<16x32xf32>
    %200 = vector.broadcast %179 : vector<1x32xf32> to vector<16x32xf32>
    %201 = arith.addf %199, %200 : vector<16x32xf32>
    %202 = arith.truncf %201 : vector<16x32xf32> to vector<16x32xbf16>
    %c1_66 = arith.constant 1 : index
    %c0_67 = arith.constant 0 : index
    %c0_68 = arith.constant 0 : index
    %203 = vector.load %arg4[%c1_66, %c0_67, %c0_68] : memref<2x32x96xbf16, #tpu.memory_space<vmem>>, vector<1x32x96xbf16>
    %204 = vector.shape_cast %203 : vector<1x32x96xbf16> to vector<32x96xbf16>
    %cst_69 = arith.constant dense<0.000000e+00> : vector<16x96xf32>
    %205 = tpu.matmul %202, %204, %cst_69 {dimension_numbers = #tpu.dot_dimension_numbers<[1], [0], [0], [1], [0, 0, 1, 1], [], []>} : vector<16x32xbf16>, vector<32x96xbf16>, vector<16x96xf32> -> vector<16x96xf32>
    %c32 = arith.constant 32 : index
    %c0_70 = arith.constant 0 : index
    %206 = vector.load %arg3[%c32, %c0_70] : memref<48x128xf32, #tpu.memory_space<vmem>>, vector<1x96xf32>
    %207 = vector.broadcast %206 : vector<1x96xf32> to vector<16x96xf32>
    %208 = arith.addf %205, %207 : vector<16x96xf32>
    %209 = vector.extract_strided_slice %208 {offsets = [0, 0], sizes = [16, 16], strides = [1, 1]} : vector<16x96xf32> to vector<16x16xf32>
    %210 = vector.extract_strided_slice %208 {offsets = [0, 16], sizes = [16, 16], strides = [1, 1]} : vector<16x96xf32> to vector<16x16xf32>
    %211 = vector.shape_cast %209 : vector<16x16xf32> to vector<1x16x16xf32>
    %212 = vector.shape_cast %210 : vector<16x16xf32> to vector<1x16x16xf32>
    %213 = tpu.concatenate %211, %212 in 0 : vector<1x16x16xf32>, vector<1x16x16xf32> -> vector<2x16x16xf32>
    %214 = vector.extract_strided_slice %208 {offsets = [0, 32], sizes = [16, 16], strides = [1, 1]} : vector<16x96xf32> to vector<16x16xf32>
    %215 = vector.extract_strided_slice %208 {offsets = [0, 48], sizes = [16, 16], strides = [1, 1]} : vector<16x96xf32> to vector<16x16xf32>
    %216 = vector.shape_cast %214 : vector<16x16xf32> to vector<1x16x16xf32>
    %217 = vector.shape_cast %215 : vector<16x16xf32> to vector<1x16x16xf32>
    %218 = tpu.concatenate %216, %217 in 0 : vector<1x16x16xf32>, vector<1x16x16xf32> -> vector<2x16x16xf32>
    %219 = vector.extract_strided_slice %208 {offsets = [0, 64], sizes = [16, 16], strides = [1, 1]} : vector<16x96xf32> to vector<16x16xf32>
    %220 = vector.extract_strided_slice %208 {offsets = [0, 80], sizes = [16, 16], strides = [1, 1]} : vector<16x96xf32> to vector<16x16xf32>
    %221 = vector.shape_cast %219 : vector<16x16xf32> to vector<1x16x16xf32>
    %222 = vector.shape_cast %220 : vector<16x16xf32> to vector<1x16x16xf32>
    %223 = tpu.concatenate %221, %222 in 0 : vector<1x16x16xf32>, vector<1x16x16xf32> -> vector<2x16x16xf32>
    %224 = arith.truncf %213 : vector<2x16x16xf32> to vector<2x16x16xbf16>
    %225 = arith.truncf %218 : vector<2x16x16xf32> to vector<2x16x16xbf16>
    "tpu.trace_start"() <{level = 10 : i32, message = "hqd,hkd->hqk"}> : () -> ()
    %cst_71 = arith.constant dense<0.000000e+00> : vector<2x16x16xf32>
    %226 = tpu.matmul %224, %225, %cst_71 {dimension_numbers = #tpu.dot_dimension_numbers<[2], [2], [1], [1], [0, 0, 0, 1, 1, 1], [0], [0]>} : vector<2x16x16xbf16>, vector<2x16x16xbf16>, vector<2x16x16xf32> -> vector<2x16x16xf32>
    "tpu.trace_stop"() : () -> ()
    %227 = vector.broadcast %73 : vector<1x16x16xf32> to vector<2x16x16xf32>
    %228 = arith.addf %226, %227 : vector<2x16x16xf32>
    %cst_72 = arith.constant dense<0xFF800000> : vector<2x16xf32>
    %229 = vector.multi_reduction <maximumf>, %228, %cst_72 [2] : vector<2x16x16xf32> to vector<2x16xf32>
    %230 = vector.shape_cast %229 : vector<2x16xf32> to vector<2x16x1xf32>
    %231 = vector.broadcast %230 : vector<2x16x1xf32> to vector<2x16x16xf32>
    %232 = arith.subf %228, %231 : vector<2x16x16xf32>
    %233 = math.exp %232 : vector<2x16x16xf32>
    %cst_73 = arith.constant dense<0.000000e+00> : vector<2x16xf32>
    %234 = vector.multi_reduction <add>, %233, %cst_73 [2] : vector<2x16x16xf32> to vector<2x16xf32>
    %235 = vector.shape_cast %234 : vector<2x16xf32> to vector<2x16x1xf32>
    %236 = vector.broadcast %235 : vector<2x16x1xf32> to vector<2x16x16xf32>
    %237 = arith.divf %233, %236 : vector<2x16x16xf32>
    %238 = arith.truncf %237 : vector<2x16x16xf32> to vector<2x16x16xbf16>
    %239 = arith.truncf %223 : vector<2x16x16xf32> to vector<2x16x16xbf16>
    "tpu.trace_start"() <{level = 10 : i32, message = "hqk,hkd->hqd"}> : () -> ()
    %cst_74 = arith.constant dense<0.000000e+00> : vector<2x16x16xf32>
    %240 = tpu.matmul %238, %239, %cst_74 {dimension_numbers = #tpu.dot_dimension_numbers<[2], [1], [1], [2], [0, 0, 0, 1, 1, 2], [0], [0]>} : vector<2x16x16xbf16>, vector<2x16x16xbf16>, vector<2x16x16xf32> -> vector<2x16x16xf32>
    "tpu.trace_stop"() : () -> ()
    %241 = vector.extract_strided_slice %240 {offsets = [0, 0, 0], sizes = [1, 16, 16], strides = [1, 1, 1]} : vector<2x16x16xf32> to vector<1x16x16xf32>
    %242 = vector.shape_cast %241 : vector<1x16x16xf32> to vector<16x16xf32>
    %243 = vector.extract_strided_slice %240 {offsets = [1, 0, 0], sizes = [1, 16, 16], strides = [1, 1, 1]} : vector<2x16x16xf32> to vector<1x16x16xf32>
    %244 = vector.shape_cast %243 : vector<1x16x16xf32> to vector<16x16xf32>
    %245 = tpu.concatenate %242, %244 in 1 : vector<16x16xf32>, vector<16x16xf32> -> vector<16x32xf32>
    %246 = arith.truncf %245 : vector<16x32xf32> to vector<16x32xbf16>
    %c1_75 = arith.constant 1 : index
    %c0_76 = arith.constant 0 : index
    %c0_77 = arith.constant 0 : index
    %247 = vector.load %arg5[%c1_75, %c0_76, %c0_77] : memref<2x32x32xbf16, #tpu.memory_space<vmem>>, vector<1x32x32xbf16>
    %248 = vector.shape_cast %247 : vector<1x32x32xbf16> to vector<32x32xbf16>
    %cst_78 = arith.constant dense<0.000000e+00> : vector<16x32xf32>
    %249 = tpu.matmul %246, %248, %cst_78 {dimension_numbers = #tpu.dot_dimension_numbers<[1], [0], [0], [1], [0, 0, 1, 1], [], []>} : vector<16x32xbf16>, vector<32x32xbf16>, vector<16x32xf32> -> vector<16x32xf32>
    %250 = arith.addf %201, %249 : vector<16x32xf32>
    %c33 = arith.constant 33 : index
    %c0_79 = arith.constant 0 : index
    %251 = vector.load %arg3[%c33, %c0_79] : memref<48x128xf32, #tpu.memory_space<vmem>>, vector<1x32xf32>
    %252 = vector.broadcast %251 : vector<1x32xf32> to vector<16x32xf32>
    %253 = arith.addf %250, %252 : vector<16x32xf32>
    %c34 = arith.constant 34 : index
    %c0_80 = arith.constant 0 : index
    %254 = vector.load %arg3[%c34, %c0_80] : memref<48x128xf32, #tpu.memory_space<vmem>>, vector<1x32xf32>
    %c35 = arith.constant 35 : index
    %c0_81 = arith.constant 0 : index
    %255 = vector.load %arg3[%c35, %c0_81] : memref<48x128xf32, #tpu.memory_space<vmem>>, vector<1x32xf32>
    %cst_82 = arith.constant dense<0.000000e+00> : vector<16xf32>
    %256 = vector.multi_reduction <add>, %253, %cst_82 [1] : vector<16x32xf32> to vector<16xf32>
    %257 = vector.shape_cast %256 : vector<16xf32> to vector<16x1xf32>
    %cst_83 = arith.constant 3.200000e+01 : f32
    %258 = vector.broadcast %cst_83 : f32 to vector<16x1xf32>
    %259 = arith.divf %257, %258 : vector<16x1xf32>
    %260 = vector.broadcast %259 : vector<16x1xf32> to vector<16x32xf32>
    %261 = arith.subf %253, %260 : vector<16x32xf32>
    %262 = arith.mulf %261, %261 : vector<16x32xf32>
    %cst_84 = arith.constant dense<0.000000e+00> : vector<16xf32>
    %263 = vector.multi_reduction <add>, %262, %cst_84 [1] : vector<16x32xf32> to vector<16xf32>
    %264 = vector.shape_cast %263 : vector<16xf32> to vector<16x1xf32>
    %cst_85 = arith.constant 3.200000e+01 : f32
    %265 = vector.broadcast %cst_85 : f32 to vector<16x1xf32>
    %266 = arith.divf %264, %265 : vector<16x1xf32>
    %267 = vector.broadcast %259 : vector<16x1xf32> to vector<16x32xf32>
    %268 = arith.subf %253, %267 : vector<16x32xf32>
    %cst_86 = arith.constant 9.99999996E-13 : f32
    %269 = vector.broadcast %cst_86 : f32 to vector<16x1xf32>
    %270 = arith.addf %266, %269 : vector<16x1xf32>
    %271 = math.rsqrt %270 : vector<16x1xf32>
    %272 = vector.broadcast %271 : vector<16x1xf32> to vector<16x32xf32>
    %273 = arith.mulf %268, %272 : vector<16x32xf32>
    %274 = vector.broadcast %254 : vector<1x32xf32> to vector<16x32xf32>
    %275 = arith.mulf %273, %274 : vector<16x32xf32>
    %276 = vector.broadcast %255 : vector<1x32xf32> to vector<16x32xf32>
    %277 = arith.addf %275, %276 : vector<16x32xf32>
    %278 = arith.truncf %277 : vector<16x32xf32> to vector<16x32xbf16>
    %c1_87 = arith.constant 1 : index
    %c0_88 = arith.constant 0 : index
    %c0_89 = arith.constant 0 : index
    %279 = vector.load %arg6[%c1_87, %c0_88, %c0_89] : memref<2x32x64xbf16, #tpu.memory_space<vmem>>, vector<1x32x64xbf16>
    %280 = vector.shape_cast %279 : vector<1x32x64xbf16> to vector<32x64xbf16>
    %cst_90 = arith.constant dense<0.000000e+00> : vector<16x64xf32>
    %281 = tpu.matmul %278, %280, %cst_90 {dimension_numbers = #tpu.dot_dimension_numbers<[1], [0], [0], [1], [0, 0, 1, 1], [], []>} : vector<16x32xbf16>, vector<32x64xbf16>, vector<16x64xf32> -> vector<16x64xf32>
    %c36 = arith.constant 36 : index
    %c0_91 = arith.constant 0 : index
    %282 = vector.load %arg3[%c36, %c0_91] : memref<48x128xf32, #tpu.memory_space<vmem>>, vector<1x64xf32>
    %283 = vector.broadcast %282 : vector<1x64xf32> to vector<16x64xf32>
    %284 = arith.addf %281, %283 : vector<16x64xf32>
    %285 = arith.mulf %284, %284 : vector<16x64xf32>
    %286 = arith.mulf %284, %285 : vector<16x64xf32>
    %cst_92 = arith.constant 4.471500e-02 : f32
    %287 = vector.broadcast %cst_92 : f32 to vector<16x64xf32>
    %288 = arith.mulf %287, %286 : vector<16x64xf32>
    %289 = arith.addf %284, %288 : vector<16x64xf32>
    %cst_93 = arith.constant 0.797884583 : f32
    %290 = vector.broadcast %cst_93 : f32 to vector<16x64xf32>
    %291 = arith.mulf %290, %289 : vector<16x64xf32>
    %292 = math.tanh %291 : vector<16x64xf32>
    %cst_94 = arith.constant 1.000000e+00 : f32
    %293 = vector.broadcast %cst_94 : f32 to vector<16x64xf32>
    %294 = arith.addf %293, %292 : vector<16x64xf32>
    %cst_95 = arith.constant 5.000000e-01 : f32
    %295 = vector.broadcast %cst_95 : f32 to vector<16x64xf32>
    %296 = arith.mulf %295, %294 : vector<16x64xf32>
    %297 = arith.mulf %284, %296 : vector<16x64xf32>
    %298 = arith.truncf %297 : vector<16x64xf32> to vector<16x64xbf16>
    %c1_96 = arith.constant 1 : index
    %c0_97 = arith.constant 0 : index
    %c0_98 = arith.constant 0 : index
    %299 = vector.load %arg7[%c1_96, %c0_97, %c0_98] : memref<2x64x32xbf16, #tpu.memory_space<vmem>>, vector<1x64x32xbf16>
    %300 = vector.shape_cast %299 : vector<1x64x32xbf16> to vector<64x32xbf16>
    %cst_99 = arith.constant dense<0.000000e+00> : vector<16x32xf32>
    %301 = tpu.matmul %298, %300, %cst_99 {dimension_numbers = #tpu.dot_dimension_numbers<[1], [0], [0], [1], [0, 0, 1, 1], [], []>} : vector<16x64xbf16>, vector<64x32xbf16>, vector<16x32xf32> -> vector<16x32xf32>
    %c37 = arith.constant 37 : index
    %c0_100 = arith.constant 0 : index
    %302 = vector.load %arg3[%c37, %c0_100] : memref<48x128xf32, #tpu.memory_space<vmem>>, vector<1x32xf32>
    %303 = vector.broadcast %302 : vector<1x32xf32> to vector<16x32xf32>
    %304 = arith.addf %301, %303 : vector<16x32xf32>
    %305 = arith.addf %277, %304 : vector<16x32xf32>
    %c38 = arith.constant 38 : index
    %c0_101 = arith.constant 0 : index
    %306 = vector.load %arg3[%c38, %c0_101] : memref<48x128xf32, #tpu.memory_space<vmem>>, vector<1x32xf32>
    %c39 = arith.constant 39 : index
    %c0_102 = arith.constant 0 : index
    %307 = vector.load %arg3[%c39, %c0_102] : memref<48x128xf32, #tpu.memory_space<vmem>>, vector<1x32xf32>
    %cst_103 = arith.constant dense<0.000000e+00> : vector<16xf32>
    %308 = vector.multi_reduction <add>, %305, %cst_103 [1] : vector<16x32xf32> to vector<16xf32>
    %309 = vector.shape_cast %308 : vector<16xf32> to vector<16x1xf32>
    %cst_104 = arith.constant 3.200000e+01 : f32
    %310 = vector.broadcast %cst_104 : f32 to vector<16x1xf32>
    %311 = arith.divf %309, %310 : vector<16x1xf32>
    %312 = vector.broadcast %311 : vector<16x1xf32> to vector<16x32xf32>
    %313 = arith.subf %305, %312 : vector<16x32xf32>
    %314 = arith.mulf %313, %313 : vector<16x32xf32>
    %cst_105 = arith.constant dense<0.000000e+00> : vector<16xf32>
    %315 = vector.multi_reduction <add>, %314, %cst_105 [1] : vector<16x32xf32> to vector<16xf32>
    %316 = vector.shape_cast %315 : vector<16xf32> to vector<16x1xf32>
    %cst_106 = arith.constant 3.200000e+01 : f32
    %317 = vector.broadcast %cst_106 : f32 to vector<16x1xf32>
    %318 = arith.divf %316, %317 : vector<16x1xf32>
    %319 = vector.broadcast %311 : vector<16x1xf32> to vector<16x32xf32>
    %320 = arith.subf %305, %319 : vector<16x32xf32>
    %cst_107 = arith.constant 9.99999996E-13 : f32
    %321 = vector.broadcast %cst_107 : f32 to vector<16x1xf32>
    %322 = arith.addf %318, %321 : vector<16x1xf32>
    %323 = math.rsqrt %322 : vector<16x1xf32>
    %324 = vector.broadcast %323 : vector<16x1xf32> to vector<16x32xf32>
    %325 = arith.mulf %320, %324 : vector<16x32xf32>
    %326 = vector.broadcast %306 : vector<1x32xf32> to vector<16x32xf32>
    %327 = arith.mulf %325, %326 : vector<16x32xf32>
    %328 = vector.broadcast %307 : vector<1x32xf32> to vector<16x32xf32>
    %329 = arith.addf %327, %328 : vector<16x32xf32>
    %330 = vector.extract_strided_slice %329 {offsets = [0, 0], sizes = [1, 32], strides = [1, 1]} : vector<16x32xf32> to vector<1x32xf32>
    %331 = vector.extract_strided_slice %329 {offsets = [8, 0], sizes = [1, 32], strides = [1, 1]} : vector<16x32xf32> to vector<1x32xf32>
    %332 = tpu.concatenate %330, %331 in 0 : vector<1x32xf32>, vector<1x32xf32> -> vector<2x32xf32>
    %333 = arith.truncf %332 : vector<2x32xf32> to vector<2x32xbf16>
    %c0_108 = arith.constant 0 : index
    %c0_109 = arith.constant 0 : index
    %334 = vector.load %arg8[%c0_108, %c0_109] : memref<64x32xbf16, #tpu.memory_space<vmem>>, vector<32x32xbf16>
    %cst_110 = arith.constant dense<0.000000e+00> : vector<2x32xf32>
    %335 = tpu.matmul %333, %334, %cst_110 {dimension_numbers = #tpu.dot_dimension_numbers<[1], [0], [0], [1], [0, 0, 1, 1], [], []>} : vector<2x32xbf16>, vector<32x32xbf16>, vector<2x32xf32> -> vector<2x32xf32>
    %c40 = arith.constant 40 : index
    %c0_111 = arith.constant 0 : index
    %336 = vector.load %arg3[%c40, %c0_111] : memref<48x128xf32, #tpu.memory_space<vmem>>, vector<1x32xf32>
    %337 = vector.broadcast %336 : vector<1x32xf32> to vector<2x32xf32>
    %338 = arith.addf %335, %337 : vector<2x32xf32>
    %339 = math.tanh %338 : vector<2x32xf32>
    %340 = arith.truncf %339 : vector<2x32xf32> to vector<2x32xbf16>
    %c32_112 = arith.constant 32 : index
    %c0_113 = arith.constant 0 : index
    %341 = vector.load %arg8[%c32_112, %c0_113] : memref<64x32xbf16, #tpu.memory_space<vmem>>, vector<32x32xbf16>
    %cst_114 = arith.constant dense<0.000000e+00> : vector<2x32xf32>
    %342 = tpu.matmul %340, %341, %cst_114 {dimension_numbers = #tpu.dot_dimension_numbers<[1], [0], [0], [1], [0, 0, 1, 1], [], []>} : vector<2x32xbf16>, vector<32x32xbf16>, vector<2x32xf32> -> vector<2x32xf32>
    %c41 = arith.constant 41 : index
    %c0_115 = arith.constant 0 : index
    %343 = vector.load %arg3[%c41, %c0_115] : memref<48x128xf32, #tpu.memory_space<vmem>>, vector<1x32xf32>
    %344 = vector.broadcast %343 : vector<1x32xf32> to vector<2x32xf32>
    %345 = arith.addf %342, %344 : vector<2x32xf32>
    %346 = vector.extract_strided_slice %345 {offsets = [0, 0], sizes = [2, 4], strides = [1, 1]} : vector<2x32xf32> to vector<2x4xf32>
    %347 = tpu.iota {dimensions = array<i32: 0>} : vector<2x4xi32>
    %348 = tpu.iota {dimensions = array<i32: 1>} : vector<2x4xi32>
    %c0_i32_116 = arith.constant 0 : i32
    %349 = vector.broadcast %c0_i32_116 : i32 to vector<2x4xi32>
    %c0_i32_117 = arith.constant 0 : i32
    %350 = vector.broadcast %c0_i32_117 : i32 to vector<2x4xi32>
    %351 = arith.cmpi eq, %347, %350 : vector<2x4xi32>
    %c1_118 = arith.constant 1 : index
    %c0_119 = arith.constant 0 : index
    %352 = memref.load %arg1[%c1_118, %c0_119] : memref<2x2xi32, #tpu.memory_space<smem>>
    %353 = vector.broadcast %352 : i32 to vector<2x4xi32>
    %354 = arith.select %351, %353, %349 : vector<2x4xi1>, vector<2x4xi32>
    %c1_i32_120 = arith.constant 1 : i32
    %355 = vector.broadcast %c1_i32_120 : i32 to vector<2x4xi32>
    %356 = arith.cmpi eq, %347, %355 : vector<2x4xi32>
    %c1_121 = arith.constant 1 : index
    %c1_122 = arith.constant 1 : index
    %357 = memref.load %arg1[%c1_121, %c1_122] : memref<2x2xi32, #tpu.memory_space<smem>>
    %358 = vector.broadcast %357 : i32 to vector<2x4xi32>
    %359 = arith.select %356, %358, %354 : vector<2x4xi1>, vector<2x4xi32>
    %360 = arith.cmpi eq, %348, %359 : vector<2x4xi32>
    %361 = arith.extui %360 : vector<2x4xi1> to vector<2x4xi32>
    %362 = arith.sitofp %361 : vector<2x4xi32> to vector<2x4xf32>
    %cst_123 = arith.constant dense<0xFF800000> : vector<2xf32>
    %363 = vector.multi_reduction <maximumf>, %346, %cst_123 [1] : vector<2x4xf32> to vector<2xf32>
    %364 = vector.shape_cast %363 : vector<2xf32> to vector<2x1xf32>
    %365 = vector.broadcast %364 : vector<2x1xf32> to vector<2x4xf32>
    %366 = arith.subf %346, %365 : vector<2x4xf32>
    %367 = math.exp %366 : vector<2x4xf32>
    %cst_124 = arith.constant dense<0.000000e+00> : vector<2xf32>
    %368 = vector.multi_reduction <add>, %367, %cst_124 [1] : vector<2x4xf32> to vector<2xf32>
    %369 = vector.shape_cast %368 : vector<2xf32> to vector<2x1xf32>
    %370 = math.log %369 : vector<2x1xf32>
    %371 = vector.broadcast %370 : vector<2x1xf32> to vector<2x4xf32>
    %372 = arith.subf %366, %371 : vector<2x4xf32>
    %373 = arith.mulf %362, %372 : vector<2x4xf32>
    %cst_125 = arith.constant dense<0.000000e+00> : vector<2xf32>
    %374 = vector.multi_reduction <add>, %373, %cst_125 [1] : vector<2x4xf32> to vector<2xf32>
    %375 = vector.shape_cast %374 : vector<2xf32> to vector<2x1xf32>
    %cst_126 = arith.constant 0.000000e+00 : f32
    %376 = vector.broadcast %cst_126 : f32 to vector<2x1xf32>
    %377 = arith.subf %376, %375 : vector<2x1xf32>
    %cst_127 = arith.constant dense<0.000000e+00> : vector<1xf32>
    %378 = vector.multi_reduction <add>, %377, %cst_127 [0] : vector<2x1xf32> to vector<1xf32>
    %379 = vector.shape_cast %378 : vector<1xf32> to vector<1x1xf32>
    %cst_128 = arith.constant 2.000000e+00 : f32
    %380 = vector.broadcast %cst_128 : f32 to vector<1x1xf32>
    %381 = arith.divf %379, %380 : vector<1x1xf32>
    %c0_129 = arith.constant 0 : index
    %c0_130 = arith.constant 0 : index
    %382 = vector.load %arg9[%c0_129, %c0_130] : memref<1x1xf32, #tpu.memory_space<vmem>>, vector<1x1xf32>
    tpu.vector_store %arg9[%c0_129, %c0_130], %381 {strides = array<i32>} : memref<1x1xf32, #tpu.memory_space<vmem>>, vector<1x1xf32>,
    %383 = vector.broadcast %364 : vector<2x1xf32> to vector<2x4xf32>
    %384 = arith.cmpf oeq, %346, %383 : vector<2x4xf32>
    %c4_i32 = arith.constant 4 : i32
    %385 = vector.broadcast %c4_i32 : i32 to vector<2x4xi32>
    %386 = arith.select %384, %348, %385 : vector<2x4xi1>, vector<2x4xi32>
    %cst_131 = arith.constant dense<2147483647> : vector<2xi32>
    %387 = vector.multi_reduction <minsi>, %386, %cst_131 [1] : vector<2x4xi32> to vector<2xi32>
    %388 = vector.shape_cast %387 : vector<2xi32> to vector<2x1xi32>
    %c0_132 = arith.constant 0 : index
    %c0_133 = arith.constant 0 : index
    %389 = vector.load %arg10[%c0_132, %c0_133] : memref<2x1xi32, #tpu.memory_space<vmem>>, vector<2x1xi32>
    tpu.vector_store %arg10[%c0_132, %c0_133], %388 {strides = array<i32>} : memref<2x1xi32, #tpu.memory_space<vmem>>, vector<2x1xi32>,
    return
  }
}

</mosaic_0001>

<llo_original>
// kernel: _fused_forward.1
$region0: #{_fused_forward.1}
  #allocation0 [shape = 'u32[]', space=smem, size = 0x4, offset = 0x4, fixed_abs, tag = 'smem constant byte address 0x4 - core index']
  #allocation1 [shape = 'u32[72,128]{1,0:T(1,128)}', space=vmem, size = 0x9000, scoped, tag = 'internal scratch']
  %s0 = inlined_call_operand.vmem [shape: s32[16,2], index: 0, kind: input, shape index: {}]
  %s1 = inlined_call_operand.vmem [shape: s32[2,2], index: 1, kind: input, shape index: {}]
  %s2 = inlined_call_operand.vmem [shape: bf16[64,32], index: 2, kind: input, shape index: {}]
  %s3 = inlined_call_operand.vmem [shape: f32[48,128], index: 3, kind: input, shape index: {}]
  %s4 = inlined_call_operand.vmem [shape: bf16[2,32,96], index: 4, kind: input, shape index: {}]
  %s5 = inlined_call_operand.vmem [shape: bf16[2,32,32], index: 5, kind: input, shape index: {}]
  %s6 = inlined_call_operand.vmem [shape: bf16[2,32,64], index: 6, kind: input, shape index: {}]
  %s7 = inlined_call_operand.vmem [shape: bf16[2,64,32], index: 7, kind: input, shape index: {}]
  %s8 = inlined_call_operand.vmem [shape: bf16[64,32], index: 8, kind: input, shape index: {}]
  %s9 = inlined_call_operand.hbm [shape: f32[1,1], index: 9, kind: output, shape index: {0}]
  %s10 = inlined_call_operand.vmem [shape: s32[2,1], index: 10, kind: output, shape index: {1}]
  %11 = xla_tuple %s9, %s10
  %s12 = sld [smem:[#allocation0]]
  $region58: #{_fused_forward.1} parent=0
    _
  %s14 = ssub.s32 1, %s12
  %s15 = scalar_select 0, %s14, %s12
  $region1: #{_fused_forward.1} parent=0
    #allocation2 [shape = 'u8[1024]{0}', space=smem, size = 0x400, scoped, tag = 'input window, operand 1, single buffered']
    #allocation3 [shape = 's32[1]{0}', space=sflag, size = 0x4, scoped, tag = 'scoped memory for _fused_forward.1']
    #allocation4 [shape = 's32[1]{0}', space=sflag, size = 0x4, scoped, tag = 'scoped memory for _fused_forward.1']
    #allocation5 [shape = 'u8[512]{0}', space=vmem, size = 0x400, scoped, tag = 'output window, operand 0, single buffered']
    %16 = vsyncpa [#allocation4], 0
    %17 = vsyncpa [#allocation3], 0
    // Predicated region
    $region2: #{_fused_forward.1} parent=1 // pred_check
      _
    $region3: #{_fused_forward.1} parent=1 // pred_check_branch
      %19 = sbr.rel (0) target = $region5
    $region4: #{_fused_forward.1} parent=1 // pred_region
      _
    $region5: #{_fused_forward.1} parent=1 // pred_fallthru
      _
    // Predicated region
    $region6: #{_fused_forward.1} parent=1 // pred_check
      _
    $region7: #{_fused_forward.1} parent=1 // pred_check_branch
      %21 = sbr.rel (0) target = $region9
    $region8: #{_fused_forward.1} parent=1 // pred_region
      %23 = vsyncadd [#allocation4], 0
      %s25 = sshll.u32 %s1, 4
      %s26 = int_to_ptr.vmem [resolvable:$true] %s25
      %28 = dma.vmem_to_smem %s26, 32, [#allocation2], [#allocation4]
    $region9: #{_fused_forward.1} parent=1 // pred_fallthru
      _
    // Predicated region
    $region10: #{_fused_forward.1} parent=1 // pred_check
      _
    $region11: #{_fused_forward.1} parent=1 // pred_check_branch
      %30 = sbr.rel (0) target = $region13
    $region12: #{_fused_forward.1} parent=1 // pred_region
      _
    $region13: #{_fused_forward.1} parent=1 // pred_fallthru
      _
    // Predicated region
    $region14: #{_fused_forward.1} parent=1 // pred_check
      _
    $region15: #{_fused_forward.1} parent=1 // pred_check_branch
      %32 = sbr.rel (0) target = $region17
    $region16: #{_fused_forward.1} parent=1 // pred_region
      _
    $region17: #{_fused_forward.1} parent=1 // pred_fallthru
      _
    // Predicated region
    $region18: #{_fused_forward.1} parent=1 // pred_check
      _
    $region19: #{_fused_forward.1} parent=1 // pred_check_branch
      %34 = sbr.rel (0) target = $region21
    $region20: #{_fused_forward.1} parent=1 // pred_region
      _
    $region21: #{_fused_forward.1} parent=1 // pred_fallthru
      _
    // Predicated region
    $region22: #{_fused_forward.1} parent=1 // pred_check
      _
    $region23: #{_fused_forward.1} parent=1 // pred_check_branch
      %36 = sbr.rel (0) target = $region25
    $region24: #{_fused_forward.1} parent=1 // pred_region
      _
    $region25: #{_fused_forward.1} parent=1 // pred_fallthru
      _
    // Predicated region
    $region26: #{_fused_forward.1} parent=1 // pred_check
      _
    $region27: #{_fused_forward.1} parent=1 // pred_check_branch
      %38 = sbr.rel (0) target = $region29
    $region28: #{_fused_forward.1} parent=1 // pred_region
      _
    $region29: #{_fused_forward.1} parent=1 // pred_fallthru
      _
    // Predicated region
    $region30: #{_fused_forward.1} parent=1 // pred_check
      _
    $region31: #{_fused_forward.1} parent=1 // pred_check_branch
      %40 = sbr.rel (0) target = $region33
    $region32: #{_fused_forward.1} parent=1 // pred_region
      _
    $region33: #{_fused_forward.1} parent=1 // pred_fallthru
      _
    // Predicated region
    $region34: #{_fused_forward.1} parent=1 // pred_check
      _
    $region35: #{_fused_forward.1} parent=1 // pred_check_branch
      %42 = sbr.rel (0) target = $region37
    $region36: #{_fused_forward.1} parent=1 // pred_region
      _
    $region37: #{_fused_forward.1} parent=1 // pred_fallthru
      _
    // Predicated region
    $region38: #{_fused_forward.1} parent=1 // pred_check
      _
    $region39: #{_fused_forward.1} parent=1 // pred_check_branch
      %44 = sbr.rel (0) target = $region41
    $region40: #{_fused_forward.1} parent=1 // pred_region
      %46 = dma.done [#allocation4], 32
    $region41: #{_fused_forward.1} parent=1 // pred_fallthru
      _
    %47 = sfence
    %v49 = vld [vmem:[%s0] sm:$0xff]
    %v50 = vld [vmem:[%s0 + $0x8] sm:$0xff]
    %v51 = vlaneseq
    %v52 = vand.u32 %v51, 127
    %53 = vset.pattern.permute.xlu0 0
    %54 = vperm.xlu0 %53, %v49
    %v55 = vpop.permute.xlu0 %54
    %56 = vset.pattern.permute.xlu0 0
    %57 = vperm.xlu0 %56, %v50
    %v58 = vpop.permute.xlu0 %57
    %vm59 = vcmp.eq.s32.totalorder %v52, %v55
    %vm60 = vcmp.eq.s32.totalorder %v52, %v58
    %v61 = vsel %vm59, 1, 0
    %v62 = vsel %vm60, 1, 0
    %v63 = vcvt.s32.f32 %v61
    %v64 = vcvt.s32.f32 %v62
    %v65 = vpack.c.bf16 %v64, %v63
    %v66 = vld [vmem:[%s2] sm:$0xf]
    %v67 = vld [vmem:[%s2 + $0x4] sm:$0xf]
    %v68 = vld [vmem:[%s2 + $0x8] sm:$0xf]
    %v69 = vld [vmem:[%s2 + $0xc] sm:$0xf]
    %v70 = vld [vmem:[%s2 + $0x10] sm:$0xf]
    %v71 = vld [vmem:[%s2 + $0x14] sm:$0xf]
    %v72 = vld [vmem:[%s2 + $0x18] sm:$0xf]
    %v73 = vld [vmem:[%s2 + $0x1c] sm:$0xf]
    %vm74 = vcmp.eq.s32.totalorder %v49, 0
    %vm75 = vcmp.eq.s32.totalorder %v50, 0
    %v76 = vld [vmem:[%s3 + $0x12] sm:$0x1]
    %v77 = vld [vmem:[%s3 + $0x13] sm:$0x1]
    %v78 = vsel %vm74, 1, 0
    %v79 = vsel %vm75, 1, 0
    %80 = vset.pattern.permute.xlu0 1
    %81 = vperm.xlu0 %80, %v78
    %v82 = vpop.permute.xlu0 %81
    %83 = vset.pattern.permute.xlu0 1
    %84 = vperm.xlu0 %83, %v79
    %v85 = vpop.permute.xlu0 %84
    %vm86 = vcmp.eq.s32.totalorder %v82, 1
    %vm87 = vcmp.eq.s32.totalorder %v85, 1
    %v88 = vperm.slane %v76, 0
    %v89 = vperm.slane %v77, 0
    %v90 = vsel %vm86, %v88, %v89
    %v91 = vsel %vm87, %v88, %v89
    %v92 = vld [vmem:[%s3] sm:$0xff]
    %v93 = vld [vmem:[%s3 + $0x8] sm:$0xff]
    %v102 = vunpack.c.l.b16 %v66
    %v103 = vunpack.c.l.b16 %v67
    %v104 = vunpack.c.l.b16 %v68
    %v105 = vunpack.c.l.b16 %v69
    %v106 = vunpack.c.l.b16 %v70
    %v107 = vunpack.c.l.b16 %v71
    %v108 = vunpack.c.l.b16 %v72
    %v109 = vunpack.c.l.b16 %v73
    %v110 = vpack.c.b16 %v103, %v102
    %v111 = vpack.c.b16 %v105, %v104
    %v112 = vpack.c.b16 %v107, %v106
    %v113 = vpack.c.b16 %v109, %v108
    %vm118 = vcmask 523264
    %v120 = vsel %vm118, %v65, 0
    %122 = vmatpush.bf16.msra.mxu0 0
    %123 = vmatpush.bf16.msra.mxu0 0
    %124 = vmatpush.bf16.msra.mxu0 0
    %125 = vmatpush.bf16.msra.mxu0 0
    %126 = vmatpush.bf16.msra.mxu0 %v113
    %127 = vmatpush.bf16.msra.mxu0 %v112
    %128 = vmatpush.bf16.msra.mxu0 %v111
    %129 = vmatpush.bf16.msra.mxu0 %v110
    %130 = vmatmul.bf16.gmra.mxu0 %v120
    %v131 = vpop.f32.mrf.mxu0
    %v132 = vadd.f32 %v90, %v131
    %v133 = vpop.f32.mrf.mxu0
    %v134 = vadd.f32 %v91, %v133
    %135 = vdwg.mxu0
    %v136 = vadd.f32 %v132, %v92
    %v137 = vadd.f32 %v134, %v93
    %v138 = vld [vmem:[%s3 + $0x10] sm:$0x1]
    %v139 = vld [vmem:[%s3 + $0x11] sm:$0x1]
    %vm140 = vcmask 261120
    %v141 = vsel %vm140, %v136, 0.0
    %142 = vadd.xlane.f32.xlu0 %v141
    %v143 = vpop.xlane.xlu0 %142
    %v144 = vsel %vm140, %v137, 0.0
    %145 = vadd.xlane.f32.xlu0 %v144
    %v146 = vpop.xlane.xlu0 %145
    %v147 = vrcp.pop 32.0
    %v148 = vmul.f32 32.0, %v147
    %v149 = vsub.f32 1.0, %v148
    %v150 = vmul.f32 %v147, %v149
    %v151 = vadd.f32 %v147, %v150
    %vm152 = vweird.f32 %v147
    %v153 = vsel %vm152, %v147, %v151
    %v154 = vmul.f32 %v143, %v153
    %v155 = vmul.f32 %v146, %v153
    %v156 = vsub.f32 %v136, %v154
    %v157 = vsub.f32 %v137, %v155
    %v158 = vmul.f32 %v156, %v156
    %v159 = vmul.f32 %v157, %v157
    %v160 = vsel %vm140, %v158, 0.0
    %161 = vadd.xlane.f32.xlu0 %v160
    %v162 = vpop.xlane.xlu0 %161
    %v163 = vsel %vm140, %v159, 0.0
    %164 = vadd.xlane.f32.xlu0 %v163
    %v165 = vpop.xlane.xlu0 %164
    %v166 = vmul.f32 %v162, %v153
    %v167 = vmul.f32 %v165, %v153
    %v168 = vadd.f32 %v166, 1e-12
    %v169 = vadd.f32 %v167, 1e-12
    %v170 = vrsqrt.pop %v168
    %v171 = vmul.f32 %v170, %v168
    %v172 = vmul.f32 %v171, %v170
    %v173 = vmul.f32 0.5, %v172
    %v174 = vsub.f32 1.5, %v173
    %v175 = vmul.f32 %v170, %v174
    %vm176 = vweird.f32 %v168
    %vm177 = vweird.f32 %v170
    %vm178 = vmor %vm176, %vm177
    %v179 = vsel %vm178, %v170, %v175
    %v180 = vrsqrt.pop %v169
    %v181 = vmul.f32 %v180, %v169
    %v182 = vmul.f32 %v181, %v180
    %v183 = vmul.f32 0.5, %v182
    %v184 = vsub.f32 1.5, %v183
    %v185 = vmul.f32 %v180, %v184
    %vm186 = vweird.f32 %v169
    %vm187 = vweird.f32 %v180
    %vm188 = vmor %vm186, %vm187
    %v189 = vsel %vm188, %v180, %v185
    %v190 = vmul.f32 %v156, %v179
    %v191 = vmul.f32 %v157, %v189
    %v192 = vperm.slane %v138, 0
    %v193 = vmul.f32 %v190, %v192
    %v194 = vmul.f32 %v191, %v192
    %v195 = vperm.slane %v139, 0
    %v196 = vadd.f32 %v193, %v195
    %v197 = vadd.f32 %v194, %v195
    %v198 = vlaneseq
    %v199 = vshrl.u32 %v198, 7
    %v200 = vadd.s32 %v199, 8
    %v201 = vshra.s32 %v199, 3
    %v202 = vshra.s32 %v200, 3
    %v203 = vshra.s32 %v52, 3
    %v204 = vand.u32 %v52, 7
    %vm205 = vcmp.eq.s32.totalorder %v203, 0
    %s206 = sld [smem:[#allocation2]]
    %v207 = vstv %s206
    %v208 = vsel %vm205, %v207, 0
    %vm209 = vcmp.eq.s32.totalorder %v203, 1
    %s210 = sld [smem:[#allocation2 + $0x1]]
    %v211 = vstv %s210
    %v212 = vsel %vm209, %v211, %v208
    %vm213 = vcmp.eq.s32.totalorder %v201, %v203
    %vm214 = vcmp.eq.s32.totalorder %v202, %v203
    %vm215 = vcmp.lt.s32.totalorder %v204, %v212
    %vm216 = vmand %vm213, %vm215
    %vm217 = vmand %vm214, %vm215
    %v218 = vsel %vm216, 0.0, -1e+09
    %v219 = vsel %vm217, 0.0, -1e+09
    %v220 = vpack.c.bf16 %v197, %v196
    %v221 = vld [vmem:[%s4] sm:$0xf]
    %v222 = vld [vmem:[%s4 + $0x4] sm:$0xf]
    %v223 = vld [vmem:[%s4 + $0x8] sm:$0xf]
    %v224 = vld [vmem:[%s4 + $0xc] sm:$0xf]
    %v225 = vld [vmem:[%s3 + $0x18] sm:$0x1]
    %v226 = vperm.slane %v225, 0
    %v231 = vunpack.c.l.b16 %v221
    %v232 = vunpack.c.l.b16 %v222
    %v233 = vunpack.c.l.b16 %v223
    %v234 = vunpack.c.l.b16 %v224
    %v235 = vpack.c.b16 %v232, %v231
    %v236 = vpack.c.b16 %v234, %v233
    %v240 = vsel %vm140, %v220, 0
    %242 = vmatpush.bf16.msra.mxu0 0
    %243 = vmatpush.bf16.msra.mxu0 0
    %244 = vmatpush.bf16.msra.mxu0 0
    %245 = vmatpush.bf16.msra.mxu0 0
    %246 = vmatpush.bf16.msra.mxu0 0
    %247 = vmatpush.bf16.msra.mxu0 0
    %248 = vmatpush.bf16.msra.mxu0 %v236
    %249 = vmatpush.bf16.msra.mxu0 %v235
    %250 = vmatmul.bf16.gmra.mxu0 %v240
    %v251 = vpop.f32.mrf.mxu0
    %v252 = vadd.f32 %v226, %v251
    %v253 = vpop.f32.mrf.mxu0
    %v254 = vadd.f32 %v226, %v253
    %255 = vdwg.mxu0
    %258 = vrot.lane.b32.xlu0 %v252, 112
    %v259 = vpop.permute.xlu0 %258
    %260 = vrot.lane.b32.xlu0 %v254, 112
    %v261 = vpop.permute.xlu0 %260
    %v264 = vpack.c.bf16 %v252, %v252
    %v265 = vpack.c.bf16 %v254, %v254
    %v266 = vpack.c.bf16 %v259, %v259
    %v267 = vpack.c.bf16 %v261, %v261
    %v270 = vunpack.c.l.b16 %v264
    %v271 = vunpack.c.l.b16 %v265
    %v272 = vpack.c.b16 %v271, %v270
    %273 = vrot.lane.b32.xlu0 %v272, 96
    %v274 = vpop.permute.xlu0 %273
    %vm275 = vcmask 130048
    %v277 = vsel %vm275, %v272, 0
    %v280 = vsel %vm275, %v274, 0
    %282 = vmatpush.bf16.xpose.msra.mxu0 0
    %283 = vmatpush.bf16.xpose.msra.mxu0 0
    %284 = vmatpush.bf16.xpose.msra.mxu0 0
    %285 = vmatpush.bf16.xpose.msra.mxu0 0
    %286 = vmatpush.bf16.xpose.msra.mxu0 0
    %287 = vmatpush.bf16.xpose.msra.mxu0 0
    %288 = vmatpush.bf16.xpose.msra.mxu0 0
    %289 = vmatpush.bf16.xpose.msra.mxu0 %v280
    %290 = vmatmul.bf16.gmra.mxu0 %v277
    %v291 = vpop.f32.mrf.mxu0
    %v292 = vadd.f32 %v218, %v291
    %v293 = vpop.f32.mrf.mxu0
    %v294 = vadd.f32 %v219, %v293
    %295 = vdwg.mxu0
    %v298 = vunpack.c.l.b16 %v266
    %v299 = vunpack.c.l.b16 %v267
    %v300 = vpack.c.b16 %v299, %v298
    %301 = vrot.lane.b32.xlu0 %v300, 96
    %v302 = vpop.permute.xlu0 %301
    %v304 = vsel %vm275, %v300, 0
    %v307 = vsel %vm275, %v302, 0
    %309 = vmatpush.bf16.xpose.msra.mxu0 0
    %310 = vmatpush.bf16.xpose.msra.mxu0 0
    %311 = vmatpush.bf16.xpose.msra.mxu0 0
    %312 = vmatpush.bf16.xpose.msra.mxu0 0
    %313 = vmatpush.bf16.xpose.msra.mxu0 0
    %314 = vmatpush.bf16.xpose.msra.mxu0 0
    %315 = vmatpush.bf16.xpose.msra.mxu0 0
    %316 = vmatpush.bf16.xpose.msra.mxu0 %v307
    %317 = vmatmul.bf16.gmra.mxu0 %v304
    %v318 = vpop.f32.mrf.mxu0
    %v319 = vadd.f32 %v218, %v318
    %v320 = vpop.f32.mrf.mxu0
    %v321 = vadd.f32 %v219, %v320
    %322 = vdwg.mxu0
    %v323 = vsel %vm275, %v292, -inf
    %324 = vmax.xlane.f32.xlu0 %v323
    %v325 = vpop.xlane.xlu0 %324
    %v326 = vsel %vm275, %v294, -inf
    %327 = vmax.xlane.f32.xlu0 %v326
    %v328 = vpop.xlane.xlu0 %327
    %v329 = vsel %vm275, %v319, -inf
    %330 = vmax.xlane.f32.xlu0 %v329
    %v331 = vpop.xlane.xlu0 %330
    %v332 = vsel %vm275, %v321, -inf
    %333 = vmax.xlane.f32.xlu0 %v332
    %v334 = vpop.xlane.xlu0 %333
    %v335 = vsub.f32 %v292, %v325
    %v336 = vsub.f32 %v294, %v328
    %v337 = vsub.f32 %v319, %v331
    %v338 = vsub.f32 %v321, %v334
    %v339 = vmul.f32 %v335, 1.442695
    %v340 = vpow.pop %v339
    %v341 = vmul.f32 %v336, 1.442695
    %v342 = vpow.pop %v341
    %v343 = vmul.f32 %v337, 1.442695
    %v344 = vpow.pop %v343
    %v345 = vmul.f32 %v338, 1.442695
    %v346 = vpow.pop %v345
    %v347 = vsel %vm275, %v340, 0.0
    %348 = vadd.xlane.f32.xlu0 %v347
    %v349 = vpop.xlane.xlu0 %348
    %v350 = vsel %vm275, %v342, 0.0
    %351 = vadd.xlane.f32.xlu0 %v350
    %v352 = vpop.xlane.xlu0 %351
    %v353 = vsel %vm275, %v344, 0.0
    %354 = vadd.xlane.f32.xlu0 %v353
    %v355 = vpop.xlane.xlu0 %354
    %v356 = vsel %vm275, %v346, 0.0
    %357 = vadd.xlane.f32.xlu0 %v356
    %v358 = vpop.xlane.xlu0 %357
    %v359 = vrcp.pop %v349
    %v360 = vmul.f32 %v349, %v359
    %v361 = vsub.f32 1.0, %v360
    %v362 = vmul.f32 %v359, %v361
    %v363 = vadd.f32 %v359, %v362
    %vm364 = vweird.f32 %v349
    %vm365 = vweird.f32 %v359
    %vm366 = vmor %vm364, %vm365
    %v367 = vsel %vm366, %v359, %v363
    %v368 = vand.u32 2147483647, %v349
    %vm369 = vcmp.eq.f32.partialorder %v368, 8.507059e+37
    %v370 = vand.u32 %v349, 2147483648
    %v371 = vor.u32 1.1754944e-38, %v370
    %v372 = vsel %vm369, %v371, %v367
    %v373 = vmul.f32 %v340, %v372
    %v374 = vrcp.pop %v352
    %v375 = vmul.f32 %v352, %v374
    %v376 = vsub.f32 1.0, %v375
    %v377 = vmul.f32 %v374, %v376
    %v378 = vadd.f32 %v374, %v377
    %vm379 = vweird.f32 %v352
    %vm380 = vweird.f32 %v374
    %vm381 = vmor %vm379, %vm380
    %v382 = vsel %vm381, %v374, %v378
    %v383 = vand.u32 2147483647, %v352
    %vm384 = vcmp.eq.f32.partialorder %v383, 8.507059e+37
    %v385 = vand.u32 %v352, 2147483648
    %v386 = vor.u32 1.1754944e-38, %v385
    %v387 = vsel %vm384, %v386, %v382
    %v388 = vmul.f32 %v342, %v387
    %v389 = vrcp.pop %v355
    %v390 = vmul.f32 %v355, %v389
    %v391 = vsub.f32 1.0, %v390
    %v392 = vmul.f32 %v389, %v391
    %v393 = vadd.f32 %v389, %v392
    %vm394 = vweird.f32 %v355
    %vm395 = vweird.f32 %v389
    %vm396 = vmor %vm394, %vm395
    %v397 = vsel %vm396, %v389, %v393
    %v398 = vand.u32 2147483647, %v355
    %vm399 = vcmp.eq.f32.partialorder %v398, 8.507059e+37
    %v400 = vand.u32 %v355, 2147483648
    %v401 = vor.u32 1.1754944e-38, %v400
    %v402 = vsel %vm399, %v401, %v397
    %v403 = vmul.f32 %v344, %v402
    %v404 = vrcp.pop %v358
    %v405 = vmul.f32 %v358, %v404
    %v406 = vsub.f32 1.0, %v405
    %v407 = vmul.f32 %v404, %v406
    %v408 = vadd.f32 %v404, %v407
    %vm409 = vweird.f32 %v358
    %vm410 = vweird.f32 %v404
    %vm411 = vmor %vm409, %vm410
    %v412 = vsel %vm411, %v404, %v408
    %v413 = vand.u32 2147483647, %v358
    %vm414 = vcmp.eq.f32.partialorder %v413, 8.507059e+37
    %v415 = vand.u32 %v358, 2147483648
    %v416 = vor.u32 1.1754944e-38, %v415
    %v417 = vsel %vm414, %v416, %v412
    %v418 = vmul.f32 %v346, %v417
    %v419 = vpack.c.bf16 %v373, %v373
    %v420 = vpack.c.bf16 %v388, %v388
    %v421 = vpack.c.bf16 %v403, %v403
    %v422 = vpack.c.bf16 %v418, %v418
    %v425 = vunpack.c.l.b16 %v419
    %v426 = vunpack.c.l.b16 %v420
    %v427 = vpack.c.b16 %v426, %v425
    %428 = vrot.lane.b32.xlu0 %v272, 64
    %v429 = vpop.permute.xlu0 %428
    %v432 = vsel %vm275, %v427, 0
    %434 = vmatpush.bf16.msra.mxu0 0
    %435 = vmatpush.bf16.msra.mxu0 0
    %436 = vmatpush.bf16.msra.mxu0 0
    %437 = vmatpush.bf16.msra.mxu0 0
    %438 = vmatpush.bf16.msra.mxu0 0
    %439 = vmatpush.bf16.msra.mxu0 0
    %440 = vmatpush.bf16.msra.mxu0 0
    %441 = vmatpush.bf16.msra.mxu0 %v429
    %442 = vmatmul.bf16.gmra.mxu0 %v432
    %v443 = vpop.f32.mrf.mxu0
    %v444 = vadd.f32 0.0, %v443
    %v445 = vpop.f32.mrf.mxu0
    %v446 = vadd.f32 0.0, %v445
    %447 = vdwg.mxu0
    %v450 = vunpack.c.l.b16 %v421
    %v451 = vunpack.c.l.b16 %v422
    %v452 = vpack.c.b16 %v451, %v450
    %453 = vrot.lane.b32.xlu0 %v300, 64
    %v454 = vpop.permute.xlu0 %453
    %v457 = vsel %vm275, %v452, 0
    %459 = vmatpush.bf16.msra.mxu0 0
    %460 = vmatpush.bf16.msra.mxu0 0
    %461 = vmatpush.bf16.msra.mxu0 0
    %462 = vmatpush.bf16.msra.mxu0 0
    %463 = vmatpush.bf16.msra.mxu0 0
    %464 = vmatpush.bf16.msra.mxu0 0
    %465 = vmatpush.bf16.msra.mxu0 0
    %466 = vmatpush.bf16.msra.mxu0 %v454
    %467 = vmatmul.bf16.gmra.mxu0 %v457
    %v468 = vpop.f32.mrf.mxu0
    %v469 = vadd.f32 0.0, %v468
    %v470 = vpop.f32.mrf.mxu0
    %v471 = vadd.f32 0.0, %v470
    %472 = vdwg.mxu0
    %475 = vrot.lane.b32.xlu0 %v469, 16
    %v476 = vpop.permute.xlu0 %475
    %477 = vrot.lane.b32.xlu0 %v471, 16
    %v478 = vpop.permute.xlu0 %477
    %v481 = vsel %vm275, %v444, %v476
    %v482 = vsel %vm275, %v446, %v478
    %v483 = vpack.c.bf16 %v482, %v481
    %v484 = vld [vmem:[%s5] sm:$0xf]
    %v485 = vld [vmem:[%s5 + $0x4] sm:$0xf]
    %v486 = vld [vmem:[%s5 + $0x8] sm:$0xf]
    %v487 = vld [vmem:[%s5 + $0xc] sm:$0xf]
    %v492 = vunpack.c.l.b16 %v484
    %v493 = vunpack.c.l.b16 %v485
    %v494 = vunpack.c.l.b16 %v486
    %v495 = vunpack.c.l.b16 %v487
    %v496 = vpack.c.b16 %v493, %v492
    %v497 = vpack.c.b16 %v495, %v494
    %v501 = vsel %vm140, %v483, 0
    %503 = vmatpush.bf16.msra.mxu0 0
    %504 = vmatpush.bf16.msra.mxu0 0
    %505 = vmatpush.bf16.msra.mxu0 0
    %506 = vmatpush.bf16.msra.mxu0 0
    %507 = vmatpush.bf16.msra.mxu0 0
    %508 = vmatpush.bf16.msra.mxu0 0
    %509 = vmatpush.bf16.msra.mxu0 %v497
    %510 = vmatpush.bf16.msra.mxu0 %v496
    %511 = vmatmul.bf16.gmra.mxu0 %v501
    %v512 = vpop.f32.mrf.mxu0
    %v513 = vadd.f32 0.0, %v512
    %v514 = vpop.f32.mrf.mxu0
    %v515 = vadd.f32 0.0, %v514
    %516 = vdwg.mxu0
    %v517 = vadd.f32 %v196, %v513
    %v518 = vadd.f32 %v197, %v515
    %v519 = vld [vmem:[%s3 + $0x19] sm:$0x1]
    %v520 = vperm.slane %v519, 0
    %v521 = vadd.f32 %v517, %v520
    %v522 = vadd.f32 %v518, %v520
    %v523 = vld [vmem:[%s3 + $0x1a] sm:$0x1]
    %v524 = vld [vmem:[%s3 + $0x1b] sm:$0x1]
    %v525 = vsel %vm140, %v521, 0.0
    %526 = vadd.xlane.f32.xlu0 %v525
    %v527 = vpop.xlane.xlu0 %526
    %v528 = vsel %vm140, %v522, 0.0
    %529 = vadd.xlane.f32.xlu0 %v528
    %v530 = vpop.xlane.xlu0 %529
    %v531 = vmul.f32 %v527, %v153
    %v532 = vmul.f32 %v530, %v153
    %v533 = vsub.f32 %v521, %v531
    %v534 = vsub.f32 %v522, %v532
    %v535 = vmul.f32 %v533, %v533
    %v536 = vmul.f32 %v534, %v534
    %v537 = vsel %vm140, %v535, 0.0
    %538 = vadd.xlane.f32.xlu0 %v537
    %v539 = vpop.xlane.xlu0 %538
    %v540 = vsel %vm140, %v536, 0.0
    %541 = vadd.xlane.f32.xlu0 %v540
    %v542 = vpop.xlane.xlu0 %541
    %v543 = vmul.f32 %v539, %v153
    %v544 = vmul.f32 %v542, %v153
    %v545 = vadd.f32 %v543, 1e-12
    %v546 = vadd.f32 %v544, 1e-12
    %v547 = vrsqrt.pop %v545
    %v548 = vmul.f32 %v547, %v545
    %v549 = vmul.f32 %v548, %v547
    %v550 = vmul.f32 0.5, %v549
    %v551 = vsub.f32 1.5, %v550
    %v552 = vmul.f32 %v547, %v551
    %vm553 = vweird.f32 %v545
    %vm554 = vweird.f32 %v547
    %vm555 = vmor %vm553, %vm554
    %v556 = vsel %vm555, %v547, %v552
    %v557 = vrsqrt.pop %v546
    %v558 = vmul.f32 %v557, %v546
    %v559 = vmul.f32 %v558, %v557
    %v560 = vmul.f32 0.5, %v559
    %v561 = vsub.f32 1.5, %v560
    %v562 = vmul.f32 %v557, %v561
    %vm563 = vweird.f32 %v546
    %vm564 = vweird.f32 %v557
    %vm565 = vmor %vm563, %vm564
    %v566 = vsel %vm565, %v557, %v562
    %v567 = vmul.f32 %v533, %v556
    %v568 = vmul.f32 %v534, %v566
    %v569 = vperm.slane %v523, 0
    %v570 = vmul.f32 %v567, %v569
    %v571 = vmul.f32 %v568, %v569
    %v572 = vperm.slane %v524, 0
    %v573 = vadd.f32 %v570, %v572
    %v574 = vadd.f32 %v571, %v572
    %v575 = vpack.c.bf16 %v574, %v573
    %v576 = vld [vmem:[%s6] sm:$0xf]
    %v577 = vld [vmem:[%s6 + $0x4] sm:$0xf]
    %v578 = vld [vmem:[%s6 + $0x8] sm:$0xf]
    %v579 = vld [vmem:[%s6 + $0xc] sm:$0xf]
    %v580 = vld [vmem:[%s3 + $0x1c] sm:$0x1]
    %v581 = vperm.slane %v580, 0
    %v586 = vunpack.c.l.b16 %v576
    %v587 = vunpack.c.l.b16 %v577
    %v588 = vunpack.c.l.b16 %v578
    %v589 = vunpack.c.l.b16 %v579
    %v590 = vpack.c.b16 %v587, %v586
    %v591 = vpack.c.b16 %v589, %v588
    %v595 = vsel %vm140, %v575, 0
    %597 = vmatpush.bf16.msra.mxu0 0
    %598 = vmatpush.bf16.msra.mxu0 0
    %599 = vmatpush.bf16.msra.mxu0 0
    %600 = vmatpush.bf16.msra.mxu0 0
    %601 = vmatpush.bf16.msra.mxu0 0
    %602 = vmatpush.bf16.msra.mxu0 0
    %603 = vmatpush.bf16.msra.mxu0 %v591
    %604 = vmatpush.bf16.msra.mxu0 %v590
    %605 = vmatmul.bf16.gmra.mxu0 %v595
    %v606 = vpop.f32.mrf.mxu0
    %v607 = vadd.f32 %v581, %v606
    %v608 = vpop.f32.mrf.mxu0
    %v609 = vadd.f32 %v581, %v608
    %610 = vdwg.mxu0
    %v611 = vmul.f32 %v607, %v607
    %v612 = vmul.f32 %v609, %v609
    %v613 = vmul.f32 %v607, %v611
    %v614 = vmul.f32 %v609, %v612
    %v615 = vmul.f32 %v613, 0.044715
    %v616 = vmul.f32 %v614, 0.044715
    %v617 = vadd.f32 %v607, %v615
    %v618 = vadd.f32 %v609, %v616
    %v619 = vmul.f32 %v617, 0.7978846
    %v620 = vmul.f32 %v618, 0.7978846
    %v621 = vtanh.pop %v619
    %v622 = vtanh.pop %v620
    %v623 = vadd.f32 %v621, 1.0
    %v624 = vadd.f32 %v622, 1.0
    %v625 = vmul.f32 %v623, 0.5
    %v626 = vmul.f32 %v624, 0.5
    %v627 = vmul.f32 %v607, %v625
    %v628 = vmul.f32 %v609, %v626
    %v629 = vpack.c.bf16 %v628, %v627
    %v630 = vld [vmem:[%s7] sm:$0xf]
    %v631 = vld [vmem:[%s7 + $0x4] sm:$0xf]
    %v632 = vld [vmem:[%s7 + $0x8] sm:$0xf]
    %v633 = vld [vmem:[%s7 + $0xc] sm:$0xf]
    %v634 = vld [vmem:[%s7 + $0x10] sm:$0xf]
    %v635 = vld [vmem:[%s7 + $0x14] sm:$0xf]
    %v636 = vld [vmem:[%s7 + $0x18] sm:$0xf]
    %v637 = vld [vmem:[%s7 + $0x1c] sm:$0xf]
    %v638 = vld [vmem:[%s3 + $0x1d] sm:$0x1]
    %v639 = vperm.slane %v638, 0
    %v648 = vunpack.c.l.b16 %v630
    %v649 = vunpack.c.l.b16 %v631
    %v650 = vunpack.c.l.b16 %v632
    %v651 = vunpack.c.l.b16 %v633
    %v652 = vunpack.c.l.b16 %v634
    %v653 = vunpack.c.l.b16 %v635
    %v654 = vunpack.c.l.b16 %v636
    %v655 = vunpack.c.l.b16 %v637
    %v656 = vpack.c.b16 %v649, %v648
    %v657 = vpack.c.b16 %v651, %v650
    %v658 = vpack.c.b16 %v653, %v652
    %v659 = vpack.c.b16 %v655, %v654
    %v665 = vsel %vm118, %v629, 0
    %667 = vmatpush.bf16.msra.mxu0 0
    %668 = vmatpush.bf16.msra.mxu0 0
    %669 = vmatpush.bf16.msra.mxu0 0
    %670 = vmatpush.bf16.msra.mxu0 0
    %671 = vmatpush.bf16.msra.mxu0 %v659
    %672 = vmatpush.bf16.msra.mxu0 %v658
    %673 = vmatpush.bf16.msra.mxu0 %v657
    %674 = vmatpush.bf16.msra.mxu0 %v656
    %675 = vmatmul.bf16.gmra.mxu0 %v665
    %v676 = vpop.f32.mrf.mxu0
    %v677 = vadd.f32 %v639, %v676
    %v678 = vpop.f32.mrf.mxu0
    %v679 = vadd.f32 %v639, %v678
    %680 = vdwg.mxu0
    %v681 = vadd.f32 %v573, %v677
    %v682 = vadd.f32 %v574, %v679
    %v683 = vld [vmem:[%s3 + $0x1e] sm:$0x1]
    %v684 = vld [vmem:[%s3 + $0x1f] sm:$0x1]
    %v685 = vsel %vm140, %v681, 0.0
    %686 = vadd.xlane.f32.xlu0 %v685
    %v687 = vpop.xlane.xlu0 %686
    %v688 = vsel %vm140, %v682, 0.0
    %689 = vadd.xlane.f32.xlu0 %v688
    %v690 = vpop.xlane.xlu0 %689
    %v691 = vmul.f32 %v687, %v153
    %v692 = vmul.f32 %v690, %v153
    %v693 = vsub.f32 %v681, %v691
    %v694 = vsub.f32 %v682, %v692
    %v695 = vmul.f32 %v693, %v693
    %v696 = vmul.f32 %v694, %v694
    %v697 = vsel %vm140, %v695, 0.0
    %698 = vadd.xlane.f32.xlu0 %v697
    %v699 = vpop.xlane.xlu0 %698
    %v700 = vsel %vm140, %v696, 0.0
    %701 = vadd.xlane.f32.xlu0 %v700
    %v702 = vpop.xlane.xlu0 %701
    %v703 = vmul.f32 %v699, %v153
    %v704 = vmul.f32 %v702, %v153
    %v705 = vadd.f32 %v703, 1e-12
    %v706 = vadd.f32 %v704, 1e-12
    %v707 = vrsqrt.pop %v705
    %v708 = vmul.f32 %v707, %v705
    %v709 = vmul.f32 %v708, %v707
    %v710 = vmul.f32 0.5, %v709
    %v711 = vsub.f32 1.5, %v710
    %v712 = vmul.f32 %v707, %v711
    %vm713 = vweird.f32 %v705
    %vm714 = vweird.f32 %v707
    %vm715 = vmor %vm713, %vm714
    %v716 = vsel %vm715, %v707, %v712
    %v717 = vrsqrt.pop %v706
    %v718 = vmul.f32 %v717, %v706
    %v719 = vmul.f32 %v718, %v717
    %v720 = vmul.f32 0.5, %v719
    %v721 = vsub.f32 1.5, %v720
    %v722 = vmul.f32 %v717, %v721
    %vm723 = vweird.f32 %v706
    %vm724 = vweird.f32 %v717
    %vm725 = vmor %vm723, %vm724
    %v726 = vsel %vm725, %v717, %v722
    %v727 = vmul.f32 %v693, %v716
    %v728 = vmul.f32 %v694, %v726
    %v729 = vperm.slane %v683, 0
    %v730 = vmul.f32 %v727, %v729
    %v731 = vmul.f32 %v728, %v729
    %v732 = vperm.slane %v684, 0
    %v733 = vadd.f32 %v730, %v732
    %v734 = vadd.f32 %v731, %v732
    %v735 = vpack.c.bf16 %v734, %v733
    %s736 = scalar_lea.vmem %s4, 16
    %v737 = vld [vmem:[%s736] sm:$0xf]
    %v738 = vld [vmem:[%s736 + $0x4] sm:$0xf]
    %v739 = vld [vmem:[%s736 + $0x8] sm:$0xf]
    %v740 = vld [vmem:[%s736 + $0xc] sm:$0xf]
    %v741 = vld [vmem:[%s3 + $0x20] sm:$0x1]
    %v742 = vperm.slane %v741, 0
    %v747 = vunpack.c.l.b16 %v737
    %v748 = vunpack.c.l.b16 %v738
    %v749 = vunpack.c.l.b16 %v739
    %v750 = vunpack.c.l.b16 %v740
    %v751 = vpack.c.b16 %v748, %v747
    %v752 = vpack.c.b16 %v750, %v749
    %v756 = vsel %vm140, %v735, 0
    %758 = vmatpush.bf16.msra.mxu0 0
    %759 = vmatpush.bf16.msra.mxu0 0
    %760 = vmatpush.bf16.msra.mxu0 0
    %761 = vmatpush.bf16.msra.mxu0 0
    %762 = vmatpush.bf16.msra.mxu0 0
    %763 = vmatpush.bf16.msra.mxu0 0
    %764 = vmatpush.bf16.msra.mxu0 %v752
    %765 = vmatpush.bf16.msra.mxu0 %v751
    %766 = vmatmul.bf16.gmra.mxu0 %v756
    %v767 = vpop.f32.mrf.mxu0
    %v768 = vadd.f32 %v742, %v767
    %v769 = vpop.f32.mrf.mxu0
    %v770 = vadd.f32 %v742, %v769
    %771 = vdwg.mxu0
    %774 = vrot.lane.b32.xlu0 %v768, 112
    %v775 = vpop.permute.xlu0 %774
    %776 = vrot.lane.b32.xlu0 %v770, 112
    %v777 = vpop.permute.xlu0 %776
    %v780 = vpack.c.bf16 %v768, %v768
    %v781 = vpack.c.bf16 %v770, %v770
    %v782 = vpack.c.bf16 %v775, %v775
    %v783 = vpack.c.bf16 %v777, %v777
    %v786 = vunpack.c.l.b16 %v780
    %v787 = vunpack.c.l.b16 %v781
    %v788 = vpack.c.b16 %v787, %v786
    %789 = vrot.lane.b32.xlu0 %v788, 96
    %v790 = vpop.permute.xlu0 %789
    %v792 = vsel %vm275, %v788, 0
    %v795 = vsel %vm275, %v790, 0
    %797 = vmatpush.bf16.xpose.msra.mxu0 0
    %798 = vmatpush.bf16.xpose.msra.mxu0 0
    %799 = vmatpush.bf16.xpose.msra.mxu0 0
    %800 = vmatpush.bf16.xpose.msra.mxu0 0
    %801 = vmatpush.bf16.xpose.msra.mxu0 0
    %802 = vmatpush.bf16.xpose.msra.mxu0 0
    %803 = vmatpush.bf16.xpose.msra.mxu0 0
    %804 = vmatpush.bf16.xpose.msra.mxu0 %v795
    %805 = vmatmul.bf16.gmra.mxu0 %v792
    %v806 = vpop.f32.mrf.mxu0
    %v807 = vadd.f32 %v218, %v806
    %v808 = vpop.f32.mrf.mxu0
    %v809 = vadd.f32 %v219, %v808
    %810 = vdwg.mxu0
    %v813 = vunpack.c.l.b16 %v782
    %v814 = vunpack.c.l.b16 %v783
    %v815 = vpack.c.b16 %v814, %v813
    %816 = vrot.lane.b32.xlu0 %v815, 96
    %v817 = vpop.permute.xlu0 %816
    %v819 = vsel %vm275, %v815, 0
    %v822 = vsel %vm275, %v817, 0
    %824 = vmatpush.bf16.xpose.msra.mxu0 0
    %825 = vmatpush.bf16.xpose.msra.mxu0 0
    %826 = vmatpush.bf16.xpose.msra.mxu0 0
    %827 = vmatpush.bf16.xpose.msra.mxu0 0
    %828 = vmatpush.bf16.xpose.msra.mxu0 0
    %829 = vmatpush.bf16.xpose.msra.mxu0 0
    %830 = vmatpush.bf16.xpose.msra.mxu0 0
    %831 = vmatpush.bf16.xpose.msra.mxu0 %v822
    %832 = vmatmul.bf16.gmra.mxu0 %v819
    %v833 = vpop.f32.mrf.mxu0
    %v834 = vadd.f32 %v218, %v833
    %v835 = vpop.f32.mrf.mxu0
    %v836 = vadd.f32 %v219, %v835
    %837 = vdwg.mxu0
    %v838 = vsel %vm275, %v807, -inf
    %839 = vmax.xlane.f32.xlu0 %v838
    %v840 = vpop.xlane.xlu0 %839
    %v841 = vsel %vm275, %v809, -inf
    %842 = vmax.xlane.f32.xlu0 %v841
    %v843 = vpop.xlane.xlu0 %842
    %v844 = vsel %vm275, %v834, -inf
    %845 = vmax.xlane.f32.xlu0 %v844
    %v846 = vpop.xlane.xlu0 %845
    %v847 = vsel %vm275, %v836, -inf
    %848 = vmax.xlane.f32.xlu0 %v847
    %v849 = vpop.xlane.xlu0 %848
    %v850 = vsub.f32 %v807, %v840
    %v851 = vsub.f32 %v809, %v843
    %v852 = vsub.f32 %v834, %v846
    %v853 = vsub.f32 %v836, %v849
    %v854 = vmul.f32 %v850, 1.442695
    %v855 = vpow.pop %v854
    %v856 = vmul.f32 %v851, 1.442695
    %v857 = vpow.pop %v856
    %v858 = vmul.f32 %v852, 1.442695
    %v859 = vpow.pop %v858
    %v860 = vmul.f32 %v853, 1.442695
    %v861 = vpow.pop %v860
    %v862 = vsel %vm275, %v855, 0.0
    %863 = vadd.xlane.f32.xlu0 %v862
    %v864 = vpop.xlane.xlu0 %863
    %v865 = vsel %vm275, %v857, 0.0
    %866 = vadd.xlane.f32.xlu0 %v865
    %v867 = vpop.xlane.xlu0 %866
    %v868 = vsel %vm275, %v859, 0.0
    %869 = vadd.xlane.f32.xlu0 %v868
    %v870 = vpop.xlane.xlu0 %869
    %v871 = vsel %vm275, %v861, 0.0
    %872 = vadd.xlane.f32.xlu0 %v871
    %v873 = vpop.xlane.xlu0 %872
    %v874 = vrcp.pop %v864
    %v875 = vmul.f32 %v864, %v874
    %v876 = vsub.f32 1.0, %v875
    %v877 = vmul.f32 %v874, %v876
    %v878 = vadd.f32 %v874, %v877
    %vm879 = vweird.f32 %v864
    %vm880 = vweird.f32 %v874
    %vm881 = vmor %vm879, %vm880
    %v882 = vsel %vm881, %v874, %v878
    %v883 = vand.u32 2147483647, %v864
    %vm884 = vcmp.eq.f32.partialorder %v883, 8.507059e+37
    %v885 = vand.u32 %v864, 2147483648
    %v886 = vor.u32 1.1754944e-38, %v885
    %v887 = vsel %vm884, %v886, %v882
    %v888 = vmul.f32 %v855, %v887
    %v889 = vrcp.pop %v867
    %v890 = vmul.f32 %v867, %v889
    %v891 = vsub.f32 1.0, %v890
    %v892 = vmul.f32 %v889, %v891
    %v893 = vadd.f32 %v889, %v892
    %vm894 = vweird.f32 %v867
    %vm895 = vweird.f32 %v889
    %vm896 = vmor %vm894, %vm895
    %v897 = vsel %vm896, %v889, %v893
    %v898 = vand.u32 2147483647, %v867
    %vm899 = vcmp.eq.f32.partialorder %v898, 8.507059e+37
    %v900 = vand.u32 %v867, 2147483648
    %v901 = vor.u32 1.1754944e-38, %v900
    %v902 = vsel %vm899, %v901, %v897
    %v903 = vmul.f32 %v857, %v902
    %v904 = vrcp.pop %v870
    %v905 = vmul.f32 %v870, %v904
    %v906 = vsub.f32 1.0, %v905
    %v907 = vmul.f32 %v904, %v906
    %v908 = vadd.f32 %v904, %v907
    %vm909 = vweird.f32 %v870
    %vm910 = vweird.f32 %v904
    %vm911 = vmor %vm909, %vm910
    %v912 = vsel %vm911, %v904, %v908
    %v913 = vand.u32 2147483647, %v870
    %vm914 = vcmp.eq.f32.partialorder %v913, 8.507059e+37
    %v915 = vand.u32 %v870, 2147483648
    %v916 = vor.u32 1.1754944e-38, %v915
    %v917 = vsel %vm914, %v916, %v912
    %v918 = vmul.f32 %v859, %v917
    %v919 = vrcp.pop %v873
    %v920 = vmul.f32 %v873, %v919
    %v921 = vsub.f32 1.0, %v920
    %v922 = vmul.f32 %v919, %v921
    %v923 = vadd.f32 %v919, %v922
    %vm924 = vweird.f32 %v873
    %vm925 = vweird.f32 %v919
    %vm926 = vmor %vm924, %vm925
    %v927 = vsel %vm926, %v919, %v923
    %v928 = vand.u32 2147483647, %v873
    %vm929 = vcmp.eq.f32.partialorder %v928, 8.507059e+37
    %v930 = vand.u32 %v873, 2147483648
    %v931 = vor.u32 1.1754944e-38, %v930
    %v932 = vsel %vm929, %v931, %v927
    %v933 = vmul.f32 %v861, %v932
    %v934 = vpack.c.bf16 %v888, %v888
    %v935 = vpack.c.bf16 %v903, %v903
    %v936 = vpack.c.bf16 %v918, %v918
    %v937 = vpack.c.bf16 %v933, %v933
    %v940 = vunpack.c.l.b16 %v934
    %v941 = vunpack.c.l.b16 %v935
    %v942 = vpack.c.b16 %v941, %v940
    %943 = vrot.lane.b32.xlu0 %v788, 64
    %v944 = vpop.permute.xlu0 %943
    %v947 = vsel %vm275, %v942, 0
    %949 = vmatpush.bf16.msra.mxu0 0
    %950 = vmatpush.bf16.msra.mxu0 0
    %951 = vmatpush.bf16.msra.mxu0 0
    %952 = vmatpush.bf16.msra.mxu0 0
    %953 = vmatpush.bf16.msra.mxu0 0
    %954 = vmatpush.bf16.msra.mxu0 0
    %955 = vmatpush.bf16.msra.mxu0 0
    %956 = vmatpush.bf16.msra.mxu0 %v944
    %957 = vmatmul.bf16.gmra.mxu0 %v947
    %v958 = vpop.f32.mrf.mxu0
    %v959 = vadd.f32 0.0, %v958
    %v960 = vpop.f32.mrf.mxu0
    %v961 = vadd.f32 0.0, %v960
    %962 = vdwg.mxu0
    %v965 = vunpack.c.l.b16 %v936
    %v966 = vunpack.c.l.b16 %v937
    %v967 = vpack.c.b16 %v966, %v965
    %968 = vrot.lane.b32.xlu0 %v815, 64
    %v969 = vpop.permute.xlu0 %968
    %v972 = vsel %vm275, %v967, 0
    %974 = vmatpush.bf16.msra.mxu0 0
    %975 = vmatpush.bf16.msra.mxu0 0
    %976 = vmatpush.bf16.msra.mxu0 0
    %977 = vmatpush.bf16.msra.mxu0 0
    %978 = vmatpush.bf16.msra.mxu0 0
    %979 = vmatpush.bf16.msra.mxu0 0
    %980 = vmatpush.bf16.msra.mxu0 0
    %981 = vmatpush.bf16.msra.mxu0 %v969
    %982 = vmatmul.bf16.gmra.mxu0 %v972
    %v983 = vpop.f32.mrf.mxu0
    %v984 = vadd.f32 0.0, %v983
    %v985 = vpop.f32.mrf.mxu0
    %v986 = vadd.f32 0.0, %v985
    %987 = vdwg.mxu0
    %990 = vrot.lane.b32.xlu0 %v984, 16
    %v991 = vpop.permute.xlu0 %990
    %992 = vrot.lane.b32.xlu0 %v986, 16
    %v993 = vpop.permute.xlu0 %992
    %v996 = vsel %vm275, %v959, %v991
    %v997 = vsel %vm275, %v961, %v993
    %v998 = vpack.c.bf16 %v997, %v996
    %s999 = scalar_lea.vmem %s5, 16
    %v1000 = vld [vmem:[%s999] sm:$0xf]
    %v1001 = vld [vmem:[%s999 + $0x4] sm:$0xf]
    %v1002 = vld [vmem:[%s999 + $0x8] sm:$0xf]
    %v1003 = vld [vmem:[%s999 + $0xc] sm:$0xf]
    %v1008 = vunpack.c.l.b16 %v1000
    %v1009 = vunpack.c.l.b16 %v1001
    %v1010 = vunpack.c.l.b16 %v1002
    %v1011 = vunpack.c.l.b16 %v1003
    %v1012 = vpack.c.b16 %v1009, %v1008
    %v1013 = vpack.c.b16 %v1011, %v1010
    %v1017 = vsel %vm140, %v998, 0
    %1019 = vmatpush.bf16.msra.mxu0 0
    %1020 = vmatpush.bf16.msra.mxu0 0
    %1021 = vmatpush.bf16.msra.mxu0 0
    %1022 = vmatpush.bf16.msra.mxu0 0
    %1023 = vmatpush.bf16.msra.mxu0 0
    %1024 = vmatpush.bf16.msra.mxu0 0
    %1025 = vmatpush.bf16.msra.mxu0 %v1013
    %1026 = vmatpush.bf16.msra.mxu0 %v1012
    %1027 = vmatmul.bf16.gmra.mxu0 %v1017
    %v1028 = vpop.f32.mrf.mxu0
    %v1029 = vadd.f32 0.0, %v1028
    %v1030 = vpop.f32.mrf.mxu0
    %v1031 = vadd.f32 0.0, %v1030
    %1032 = vdwg.mxu0
    %v1033 = vadd.f32 %v733, %v1029
    %v1034 = vadd.f32 %v734, %v1031
    %v1035 = vld [vmem:[%s3 + $0x21] sm:$0x1]
    %v1036 = vperm.slane %v1035, 0
    %v1037 = vadd.f32 %v1033, %v1036
    %v1038 = vadd.f32 %v1034, %v1036
    %v1039 = vld [vmem:[%s3 + $0x22] sm:$0x1]
    %v1040 = vld [vmem:[%s3 + $0x23] sm:$0x1]
    %v1041 = vsel %vm140, %v1037, 0.0
    %1042 = vadd.xlane.f32.xlu0 %v1041
    %v1043 = vpop.xlane.xlu0 %1042
    %v1044 = vsel %vm140, %v1038, 0.0
    %1045 = vadd.xlane.f32.xlu0 %v1044
    %v1046 = vpop.xlane.xlu0 %1045
    %v1047 = vmul.f32 %v1043, %v153
    %v1048 = vmul.f32 %v1046, %v153
    %v1049 = vsub.f32 %v1037, %v1047
    %v1050 = vsub.f32 %v1038, %v1048
    %v1051 = vmul.f32 %v1049, %v1049
    %v1052 = vmul.f32 %v1050, %v1050
    %v1053 = vsel %vm140, %v1051, 0.0
    %1054 = vadd.xlane.f32.xlu0 %v1053
    %v1055 = vpop.xlane.xlu0 %1054
    %v1056 = vsel %vm140, %v1052, 0.0
    %1057 = vadd.xlane.f32.xlu0 %v1056
    %v1058 = vpop.xlane.xlu0 %1057
    %v1059 = vmul.f32 %v1055, %v153
    %v1060 = vmul.f32 %v1058, %v153
    %v1061 = vadd.f32 %v1059, 1e-12
    %v1062 = vadd.f32 %v1060, 1e-12
    %v1063 = vrsqrt.pop %v1061
    %v1064 = vmul.f32 %v1063, %v1061
    %v1065 = vmul.f32 %v1064, %v1063
    %v1066 = vmul.f32 0.5, %v1065
    %v1067 = vsub.f32 1.5, %v1066
    %v1068 = vmul.f32 %v1063, %v1067
    %vm1069 = vweird.f32 %v1061
    %vm1070 = vweird.f32 %v1063
    %vm1071 = vmor %vm1069, %vm1070
    %v1072 = vsel %vm1071, %v1063, %v1068
    %v1073 = vrsqrt.pop %v1062
    %v1074 = vmul.f32 %v1073, %v1062
    %v1075 = vmul.f32 %v1074, %v1073
    %v1076 = vmul.f32 0.5, %v1075
    %v1077 = vsub.f32 1.5, %v1076
    %v1078 = vmul.f32 %v1073, %v1077
    %vm1079 = vweird.f32 %v1062
    %vm1080 = vweird.f32 %v1073
    %vm1081 = vmor %vm1079, %vm1080
    %v1082 = vsel %vm1081, %v1073, %v1078
    %v1083 = vmul.f32 %v1049, %v1072
    %v1084 = vmul.f32 %v1050, %v1082
    %v1085 = vperm.slane %v1039, 0
    %v1086 = vmul.f32 %v1083, %v1085
    %v1087 = vmul.f32 %v1084, %v1085
    %v1088 = vperm.slane %v1040, 0
    %v1089 = vadd.f32 %v1086, %v1088
    %v1090 = vadd.f32 %v1087, %v1088
    %v1091 = vpack.c.bf16 %v1090, %v1089
    %s1092 = scalar_lea.vmem %s6, 16
    %v1093 = vld [vmem:[%s1092] sm:$0xf]
    %v1094 = vld [vmem:[%s1092 + $0x4] sm:$0xf]
    %v1095 = vld [vmem:[%s1092 + $0x8] sm:$0xf]
    %v1096 = vld [vmem:[%s1092 + $0xc] sm:$0xf]
    %v1097 = vld [vmem:[%s3 + $0x24] sm:$0x1]
    %v1098 = vperm.slane %v1097, 0
    %v1103 = vunpack.c.l.b16 %v1093
    %v1104 = vunpack.c.l.b16 %v1094
    %v1105 = vunpack.c.l.b16 %v1095
    %v1106 = vunpack.c.l.b16 %v1096
    %v1107 = vpack.c.b16 %v1104, %v1103
    %v1108 = vpack.c.b16 %v1106, %v1105
    %v1112 = vsel %vm140, %v1091, 0
    %1114 = vmatpush.bf16.msra.mxu0 0
    %1115 = vmatpush.bf16.msra.mxu0 0
    %1116 = vmatpush.bf16.msra.mxu0 0
    %1117 = vmatpush.bf16.msra.mxu0 0
    %1118 = vmatpush.bf16.msra.mxu0 0
    %1119 = vmatpush.bf16.msra.mxu0 0
    %1120 = vmatpush.bf16.msra.mxu0 %v1108
    %1121 = vmatpush.bf16.msra.mxu0 %v1107
    %1122 = vmatmul.bf16.gmra.mxu0 %v1112
    %v1123 = vpop.f32.mrf.mxu0
    %v1124 = vadd.f32 %v1098, %v1123
    %v1125 = vpop.f32.mrf.mxu0
    %v1126 = vadd.f32 %v1098, %v1125
    %1127 = vdwg.mxu0
    %v1128 = vmul.f32 %v1124, %v1124
    %v1129 = vmul.f32 %v1126, %v1126
    %v1130 = vmul.f32 %v1124, %v1128
    %v1131 = vmul.f32 %v1126, %v1129
    %v1132 = vmul.f32 %v1130, 0.044715
    %v1133 = vmul.f32 %v1131, 0.044715
    %v1134 = vadd.f32 %v1124, %v1132
    %v1135 = vadd.f32 %v1126, %v1133
    %v1136 = vmul.f32 %v1134, 0.7978846
    %v1137 = vmul.f32 %v1135, 0.7978846
    %v1138 = vtanh.pop %v1136
    %v1139 = vtanh.pop %v1137
    %v1140 = vadd.f32 %v1138, 1.0
    %v1141 = vadd.f32 %v1139, 1.0
    %v1142 = vmul.f32 %v1140, 0.5
    %v1143 = vmul.f32 %v1141, 0.5
    %v1144 = vmul.f32 %v1124, %v1142
    %v1145 = vmul.f32 %v1126, %v1143
    %v1146 = vpack.c.bf16 %v1145, %v1144
    %s1147 = scalar_lea.vmem %s7, 32
    %v1148 = vld [vmem:[%s1147] sm:$0xf]
    %v1149 = vld [vmem:[%s1147 + $0x4] sm:$0xf]
    %v1150 = vld [vmem:[%s1147 + $0x8] sm:$0xf]
    %v1151 = vld [vmem:[%s1147 + $0xc] sm:$0xf]
    %v1152 = vld [vmem:[%s1147 + $0x10] sm:$0xf]
    %v1153 = vld [vmem:[%s1147 + $0x14] sm:$0xf]
    %v1154 = vld [vmem:[%s1147 + $0x18] sm:$0xf]
    %v1155 = vld [vmem:[%s1147 + $0x1c] sm:$0xf]
    %v1156 = vld [vmem:[%s3 + $0x25] sm:$0x1]
    %v1157 = vperm.slane %v1156, 0
    %v1166 = vunpack.c.l.b16 %v1148
    %v1167 = vunpack.c.l.b16 %v1149
    %v1168 = vunpack.c.l.b16 %v1150
    %v1169 = vunpack.c.l.b16 %v1151
    %v1170 = vunpack.c.l.b16 %v1152
    %v1171 = vunpack.c.l.b16 %v1153
    %v1172 = vunpack.c.l.b16 %v1154
    %v1173 = vunpack.c.l.b16 %v1155
    %v1174 = vpack.c.b16 %v1167, %v1166
    %v1175 = vpack.c.b16 %v1169, %v1168
    %v1176 = vpack.c.b16 %v1171, %v1170
    %v1177 = vpack.c.b16 %v1173, %v1172
    %v1183 = vsel %vm118, %v1146, 0
    %1185 = vmatpush.bf16.msra.mxu0 0
    %1186 = vmatpush.bf16.msra.mxu0 0
    %1187 = vmatpush.bf16.msra.mxu0 0
    %1188 = vmatpush.bf16.msra.mxu0 0
    %1189 = vmatpush.bf16.msra.mxu0 %v1177
    %1190 = vmatpush.bf16.msra.mxu0 %v1176
    %1191 = vmatpush.bf16.msra.mxu0 %v1175
    %1192 = vmatpush.bf16.msra.mxu0 %v1174
    %1193 = vmatmul.bf16.gmra.mxu0 %v1183
    %v1194 = vpop.f32.mrf.mxu0
    %v1195 = vadd.f32 %v1157, %v1194
    %v1196 = vpop.f32.mrf.mxu0
    %v1197 = vadd.f32 %v1157, %v1196
    %1198 = vdwg.mxu0
    %v1199 = vadd.f32 %v1089, %v1195
    %v1200 = vadd.f32 %v1090, %v1197
    %v1201 = vld [vmem:[%s3 + $0x26] sm:$0x1]
    %v1202 = vld [vmem:[%s3 + $0x27] sm:$0x1]
    %v1203 = vsel %vm140, %v1199, 0.0
    %1204 = vadd.xlane.f32.xlu0 %v1203
    %v1205 = vpop.xlane.xlu0 %1204
    %v1206 = vsel %vm140, %v1200, 0.0
    %1207 = vadd.xlane.f32.xlu0 %v1206
    %v1208 = vpop.xlane.xlu0 %1207
    %v1209 = vmul.f32 %v1205, %v153
    %v1210 = vmul.f32 %v1208, %v153
    %v1211 = vsub.f32 %v1199, %v1209
    %v1212 = vsub.f32 %v1200, %v1210
    %v1213 = vmul.f32 %v1211, %v1211
    %v1214 = vmul.f32 %v1212, %v1212
    %v1215 = vsel %vm140, %v1213, 0.0
    %1216 = vadd.xlane.f32.xlu0 %v1215
    %v1217 = vpop.xlane.xlu0 %1216
    %v1218 = vsel %vm140, %v1214, 0.0
    %1219 = vadd.xlane.f32.xlu0 %v1218
    %v1220 = vpop.xlane.xlu0 %1219
    %v1221 = vmul.f32 %v1217, %v153
    %v1222 = vmul.f32 %v1220, %v153
    %v1223 = vadd.f32 %v1221, 1e-12
    %v1224 = vadd.f32 %v1222, 1e-12
    %v1225 = vrsqrt.pop %v1223
    %v1226 = vmul.f32 %v1225, %v1223
    %v1227 = vmul.f32 %v1226, %v1225
    %v1228 = vmul.f32 0.5, %v1227
    %v1229 = vsub.f32 1.5, %v1228
    %v1230 = vmul.f32 %v1225, %v1229
    %vm1231 = vweird.f32 %v1223
    %vm1232 = vweird.f32 %v1225
    %vm1233 = vmor %vm1231, %vm1232
    %v1234 = vsel %vm1233, %v1225, %v1230
    %v1235 = vrsqrt.pop %v1224
    %v1236 = vmul.f32 %v1235, %v1224
    %v1237 = vmul.f32 %v1236, %v1235
    %v1238 = vmul.f32 0.5, %v1237
    %v1239 = vsub.f32 1.5, %v1238
    %v1240 = vmul.f32 %v1235, %v1239
    %vm1241 = vweird.f32 %v1224
    %vm1242 = vweird.f32 %v1235
    %vm1243 = vmor %vm1241, %vm1242
    %v1244 = vsel %vm1243, %v1235, %v1240
    %v1245 = vmul.f32 %v1211, %v1234
    %v1246 = vmul.f32 %v1212, %v1244
    %v1247 = vperm.slane %v1201, 0
    %v1248 = vmul.f32 %v1245, %v1247
    %v1249 = vmul.f32 %v1246, %v1247
    %v1250 = vperm.slane %v1202, 0
    %v1251 = vadd.f32 %v1248, %v1250
    %v1252 = vadd.f32 %v1249, %v1250
    %v1254 = vrot.slane %v1252, 7
    %vm1256 = vcmask 1040384
    %v1257 = vsel %vm1256, %v1251, %v1254
    %v1258 = vpack.c.bf16 %v1257, %v1257
    %v1259 = vld [vmem:[%s8] sm:$0xf]
    %v1260 = vld [vmem:[%s8 + $0x4] sm:$0xf]
    %v1261 = vld [vmem:[%s8 + $0x8] sm:$0xf]
    %v1262 = vld [vmem:[%s8 + $0xc] sm:$0xf]
    %v1263 = vld [vmem:[%s3 + $0x28] sm:$0x1]
    %v1264 = vperm.slane %v1263, 0
    %v1269 = vunpack.c.l.b16 %v1259
    %v1270 = vunpack.c.l.b16 %v1260
    %v1271 = vunpack.c.l.b16 %v1261
    %v1272 = vunpack.c.l.b16 %v1262
    %v1273 = vpack.c.b16 %v1270, %v1269
    %v1274 = vpack.c.b16 %v1272, %v1271
    %v1278 = vsel %vm140, %v1258, 0
    %1280 = vmatpush.bf16.msra.mxu0 0
    %1281 = vmatpush.bf16.msra.mxu0 0
    %1282 = vmatpush.bf16.msra.mxu0 0
    %1283 = vmatpush.bf16.msra.mxu0 0
    %1284 = vmatpush.bf16.msra.mxu0 0
    %1285 = vmatpush.bf16.msra.mxu0 0
    %1286 = vmatpush.bf16.msra.mxu0 %v1274
    %1287 = vmatpush.bf16.msra.mxu0 %v1273
    %1288 = vmatmul.bf16.gmra.mxu0 %v1278
    %v1289 = vpop.f32.mrf.mxu0
    %v1290 = vadd.f32 %v1264, %v1289
    %v1291 = vpop.f32.mrf.mxu0
    %1292 = vdwg.mxu0
    %v1293 = vtanh.pop %v1290
    %v1294 = vpack.c.bf16 %v1293, %v1293
    %v1295 = vld [vmem:[%s8 + $0x10] sm:$0xf]
    %v1296 = vld [vmem:[%s8 + $0x14] sm:$0xf]
    %v1297 = vld [vmem:[%s8 + $0x18] sm:$0xf]
    %v1298 = vld [vmem:[%s8 + $0x1c] sm:$0xf]
    %v1299 = vld [vmem:[%s3 + $0x29] sm:$0x1]
    %v1300 = vperm.slane %v1299, 0
    %v1305 = vunpack.c.l.b16 %v1295
    %v1306 = vunpack.c.l.b16 %v1296
    %v1307 = vunpack.c.l.b16 %v1297
    %v1308 = vunpack.c.l.b16 %v1298
    %v1309 = vpack.c.b16 %v1306, %v1305
    %v1310 = vpack.c.b16 %v1308, %v1307
    %v1314 = vsel %vm140, %v1294, 0
    %1316 = vmatpush.bf16.msra.mxu0 0
    %1317 = vmatpush.bf16.msra.mxu0 0
    %1318 = vmatpush.bf16.msra.mxu0 0
    %1319 = vmatpush.bf16.msra.mxu0 0
    %1320 = vmatpush.bf16.msra.mxu0 0
    %1321 = vmatpush.bf16.msra.mxu0 0
    %1322 = vmatpush.bf16.msra.mxu0 %v1310
    %1323 = vmatpush.bf16.msra.mxu0 %v1309
    %1324 = vmatmul.bf16.gmra.mxu0 %v1314
    %v1325 = vpop.f32.mrf.mxu0
    %v1326 = vadd.f32 %v1300, %v1325
    %v1327 = vpop.f32.mrf.mxu0
    %1328 = vdwg.mxu0
    %vm1329 = vcmp.eq.s32.totalorder %v199, 0
    %s1330 = sld [smem:[#allocation2 + $0x80]]
    %v1331 = vstv %s1330
    %v1332 = vsel %vm1329, %v1331, 0
    %vm1333 = vcmp.eq.s32.totalorder %v199, 1
    %s1334 = sld [smem:[#allocation2 + $0x81]]
    %v1335 = vstv %s1334
    %v1336 = vsel %vm1333, %v1335, %v1332
    %vm1337 = vcmp.eq.s32.totalorder %v52, %v1336
    %v1338 = vsel %vm1337, 1, 0
    %v1339 = vcvt.s32.f32 %v1338
    %vm1340 = vcmask 25600
    %v1341 = vsel %vm1340, %v1326, -inf
    %1342 = vmax.xlane.f32.xlu0 %v1341
    %v1343 = vpop.xlane.xlu0 %1342
    %v1344 = vsub.f32 %v1326, %v1343
    %v1345 = vmul.f32 %v1344, 1.442695
    %v1346 = vpow.pop %v1345
    %v1347 = vsel %vm1340, %v1346, 0.0
    %1348 = vadd.xlane.f32.xlu0 %v1347
    %v1349 = vpop.xlane.xlu0 %1348
    %v1350 = vlog2.pop %v1349
    %v1351 = vmul.f32 %v1350, 0.6931472
    %v1352 = vsub.f32 %v1344, %v1351
    %v1353 = vmul.f32 %v1339, %v1352
    %v1354 = vsel %vm1340, %v1353, 0.0
    %1355 = vadd.xlane.f32.xlu0 %v1354
    %v1356 = vpop.xlane.xlu0 %1355
    %v1357 = vsub.f32 0.0, %v1356
    %vm1358 = vcmask 1041408
    %v1359 = vsel %vm1358, %v1357, 0.0
    %v1360 = vrot.slane %v1359, 4
    %v1361 = vadd.f32 %v1359, %v1360
    %v1362 = vrot.slane %v1361, 2
    %v1363 = vadd.f32 %v1361, %v1362
    %v1364 = vrot.slane %v1363, 1
    %v1365 = vadd.f32 %v1363, %v1364
    %v1366 = vrcp.pop 2.0
    %v1367 = vmul.f32 2.0, %v1366
    %v1368 = vsub.f32 1.0, %v1367
    %v1369 = vmul.f32 %v1366, %v1368
    %v1370 = vadd.f32 %v1366, %v1369
    %vm1371 = vweird.f32 %v1366
    %v1372 = vsel %vm1371, %v1366, %v1370
    %v1373 = vmul.f32 %v1365, %v1372
    %vm1374 = vcmask 0
    %1375 = vst.msk [vmem:[#allocation5] sm:$0x1] %vm1374, %v1373
    %vm1376 = vcmp.eq.f32.partialorder %v1326, %v1343
    %v1377 = vsel %vm1376, %v52, 4
    %v1378 = vsel %vm1340, %v1377, 2147483647
    %v1379 = vand.u32 %v1378, 65535
    %v1380 = vshra.s32 %v1378, 16
    %v1381 = vcvt.s32.f32 %v1379
    %v1382 = vcvt.s32.f32 %v1380
    %1383 = vmin.xlane.f32.xlu0 %v1382
    %v1384 = vpop.xlane.xlu0 %1383
    %vm1385 = vcmp.eq.f32.partialorder %v1382, %v1384
    %v1386 = vsel %vm1385, %v1381, inf
    %1387 = vmin.xlane.f32.xlu0 %v1386
    %v1388 = vpop.xlane.xlu0 %1387
    %v1389 = vcvt.f32.s32 %v1388
    %v1390 = vcvt.f32.s32 %v1384
    %v1391 = vshll.u32 %v1390, 16
    %v1392 = vadd.s32 %v1391, %v1389
    %vm1393 = vcmask 1024
    %1394 = vst.msk [vmem:[%s10] sm:$0x3] %vm1393, %v1392
    // Predicated region
    $region42: #{_fused_forward.1} parent=1 // pred_check
      _
    $region43: #{_fused_forward.1} parent=1 // pred_check_branch
      %1396 = sbr.rel (0) target = $region45
    $region44: #{_fused_forward.1} parent=1 // pred_region
      %1398 = vsyncadd [#allocation3], 0
      %s1400 = sshll.u32 [#allocation5], 4
      %s1401 = int_to_ptr.vmem [resolvable:$true] %s1400
      %s1402 = sshll.u32 %s9, 4
      %s1403 = int_to_ptr.hbm [resolvable:$true] %s1402
      %1405 = dma.vmem_to_hbm [thread:$0]  %s1401, 16, %s1403, [#allocation3]
    $region45: #{_fused_forward.1} parent=1 // pred_fallthru
      _
    // Predicated region
    $region46: #{_fused_forward.1} parent=1 // pred_check
      _
    $region47: #{_fused_forward.1} parent=1 // pred_check_branch
      %1407 = sbr.rel (0) target = $region49
    $region48: #{_fused_forward.1} parent=1 // pred_region
      _
    $region49: #{_fused_forward.1} parent=1 // pred_fallthru
      _
    // Predicated region
    $region50: #{_fused_forward.1} parent=1 // pred_check
      _
    $region51: #{_fused_forward.1} parent=1 // pred_check_branch
      %1409 = sbr.rel (0) target = $region53
    $region52: #{_fused_forward.1} parent=1 // pred_region
      %1411 = dma.done [#allocation3], 16
    $region53: #{_fused_forward.1} parent=1 // pred_fallthru
      _
    // Predicated region
    $region54: #{_fused_forward.1} parent=1 // pred_check
      _
    $region55: #{_fused_forward.1} parent=1 // pred_check_branch
      %1413 = sbr.rel (0) target = $region57
    $region56: #{_fused_forward.1} parent=1 // pred_region
      _
    $region57: #{_fused_forward.1} parent=1 // pred_fallthru
      _
    %1414 = vsyncpa [#allocation3], 1
    %1415 = vsyncpa [#allocation4], 1

</llo_original>
